<compile_context>
chip_gen: v7x
topology: tpu7x:2x2x1
jax: 0.10.0
libtpu: 0.0.40
codegen_flags: <defaults>
</compile_context>

<pallas_src>
import jax
import jax.numpy as jnp
from jax import lax
from jax.experimental import pallas as pl
from jax.experimental.pallas import tpu as pltpu

# Small model dims (time_dim=T, feature_dim=F, hidden_dim=H, bidirectional)
B, T, F, H = 2, 8, 4, 32
BP = 8                       # batch padded to the 8-sublane tile
D2 = 2 * H                   # bidirectional GRU output width (64)
D4 = 2 * D2                  # [max_pool, att_pool] concat width (128)
SEG_C = 5
CLF_SIZES = (2, 2, 3, 3, 3)
CLF_TOTAL = sum(CLF_SIZES)   # 13
LANES = 128                  # lane-dense padded output width


def scan_cls_kernel(
    x_pack_ref,   # (T*BP, 2F)  row t*BP+b = [x[b,t,:], x[b,T-1-t,:]]
    mask_ref,     # (T*BP, 1)
    batt_ref,     # (T*BP, 1)   per-timestep attention bias broadcast over batch
    wih_ref,      # (2F, 6H)    block-diag input proj, cols [r_f,r_b,z_f,z_b,n_f,n_b]
    bih_ref,      # (1, 6H)     input bias with hidden r/z biases folded in
    whh_ref,      # (2H, 6H)    block-diag hidden proj, same column order
    bhhn_ref,     # (1, 2H)     n-gate hidden bias only (stays inside r*(...))
    w_sa_ref,     # (2H, 128)   cols 0:5 = seg head, col 5 = attention score, rest 0
    b_seg_ref,    # (1, 128)
    w_clf_ref,    # (4H, 128)   cols 0:13 = fused clf heads, rest 0
    b_clf_ref,    # (1, 128)
    seg_out_ref,  # (T*BP, 128) lane-dense seg logits slab
    clf_out_ref,  # (BP, 128)   lane-dense clf logits slab
):
    whh = whh_ref[...]
    mask = mask_ref[...]                                                    # (T*BP, 1)

    # ---- hoisted input projection: one matmul covers both directions & all steps ----
    gi_all = jnp.dot(x_pack_ref[...], wih_ref[...],
                     preferred_element_type=jnp.float32) + bih_ref[...]     # (T*BP, 6H)

    # Remaining hidden bias (n gate only), pre-broadcast once (JAX does not CSE
    # broadcast_in_dim, so don't let this re-materialize inside the unroll).
    bhh_n = jnp.broadcast_to(bhhn_ref[...], (BP, D2))                       # (BP, 2H)

    # ---- fused bidirectional recurrence, fully unrolled (T == 8) ----
    # Forward half of h processes time i; backward half processes time T-1-i.
    # All per-step tensors are (8, lanes) -> tile-aligned, no sublane masking.
    # TODO(synk): on v5e, split the 192-col hidden dot into a 128-col (r/z) and a
    #             64-col (n) dot so the r/z sigmoid overlaps the MXU; fused here
    #             since v6e/v7x take 192 columns in one MXU pass.
    # TODO(synk): explicit pltpu.matmul_push_rhs to hold whh resident in the MXU
    #             across the 8 dependent steps (serial-chain latency reduction).
    # TODO(synk): for large batches add a leading batch grid axis ("parallel") so
    #             v7x's second TensorCore is used; unnecessary at B=2.
    h = jnp.zeros((BP, D2), jnp.float32)
    h_steps = []
    for i in range(T):
        gi = gi_all[i * BP:(i + 1) * BP, :]                                 # (BP, 6H)
        gh = jnp.dot(h, whh, preferred_element_type=jnp.float32)            # (BP, 6H)
        rz = jax.nn.sigmoid(gi[:, :2 * D2] + gh[:, :2 * D2])                # one 128-lane sigmoid
        r = rz[:, :D2]                                                      # [r_f, r_b]
        z = rz[:, D2:]                                                      # [z_f, z_b]
        n = jnp.tanh(gi[:, 2 * D2:] + r * (gh[:, 2 * D2:] + bhh_n))         # [n_f, n_b]
        h = (1.0 - z) * n + z * h
        h_steps.append(h)

    # ---- assemble GRU output in registers (no VMEM scratch round-trip) ----
    # fwd hidden lives in lanes [0:H) of step t, bwd hidden for time t lives in
    # lanes [H:2H) of step T-1-t -> pure per-lane select, no lane movement.
    lane_is_fwd = lax.broadcasted_iota(jnp.int32, (BP, D2), 1) < H
    x_list = [jnp.where(lane_is_fwd, h_steps[t], h_steps[T - 1 - t]) for t in range(T)]
    x_flat = jnp.concatenate(x_list, axis=0)                                # (T*BP, 2H)
    x_out = x_flat.reshape(T, BP, D2)                                       # (T, BP, 2H)

    # ---- fused seg-head + attention-score projection (lane-padded to 128 cols) ----
    y = jnp.dot(x_flat, w_sa_ref[...], preferred_element_type=jnp.float32)  # (T*BP, 128)

    # seg head: (x * m) @ W == m * (x @ W)  (mask is a per-row scalar).
    # TODO(synk): dropout is identity here (eval mode); train-time dropout not implemented.
    seg_out_ref[...] = mask * y + b_seg_ref[...]

    # ---- attention pool (tanh scores, masked exp-normalization) ----
    eij = jnp.tanh(y[:, SEG_C:SEG_C + 1] + batt_ref[...])                   # (T*BP, 1)
    a = (jnp.exp(eij) * mask).reshape(T, BP, 1)
    denom = jnp.sum(a, axis=0, keepdims=True) + 1e-10                       # (1, BP, 1)
    a = a / denom                 # exact reciprocal: once per kernel, off the hot loop
    att_pool = jnp.sum(x_out * a, axis=0)                                   # (BP, 2H)

    # ---- max pool over time (unmasked, matching torch.max(x, dim=1)) ----
    max_pool = jnp.max(x_out, axis=0)                                       # (BP, 2H)

    # ---- classifier heads on concat([max_pool, att_pool]) ----
    cat = jnp.concatenate([max_pool, att_pool], axis=-1)                    # (BP, 4H=128)
    clf_out_ref[...] = jnp.dot(cat, w_clf_ref[...],
                               preferred_element_type=jnp.float32) + b_clf_ref[...]


def pack_params(p):
    """Pack raw (torch-layout, pre-transposed) params into the fused kernel layout."""
    def pack_w(w_f, w_b):
        # w_f, w_b: (K, 3H), columns in torch gate order [r | z | n]
        k = w_f.shape[0]
        out = jnp.zeros((2 * k, 6 * H), jnp.float32)
        for g in range(3):
            out = out.at[:k, (2 * g) * H:(2 * g + 1) * H].set(w_f[:, g * H:(g + 1) * H])
            out = out.at[k:, (2 * g + 1) * H:(2 * g + 2) * H].set(w_b[:, g * H:(g + 1) * H])
        return out

    def pack_bih(bi_f, bi_b, bh_f, bh_b):
        # Fold hidden r/z biases into the input bias (valid for PyTorch GRU:
        # only the n-gate hidden bias is multiplied by r).
        parts = []
        for g in range(3):
            bf = bi_f[:, g * H:(g + 1) * H]
            bb = bi_b[:, g * H:(g + 1) * H]
            if g < 2:
                bf = bf + bh_f[:, g * H:(g + 1) * H]
                bb = bb + bh_b[:, g * H:(g + 1) * H]
            parts.extend([bf, bb])
        return jnp.concatenate(parts, axis=1)

    bhh_n = jnp.concatenate([p["bhh_f"][:, 2 * H:], p["bhh_b"][:, 2 * H:]], axis=1)

    w_sa = jnp.zeros((D2, LANES), jnp.float32)
    w_sa = w_sa.at[:, :SEG_C].set(p["w_seg"])
    w_sa = w_sa.at[:, SEG_C:SEG_C + 1].set(p["w_att"])
    b_seg = jnp.zeros((1, LANES), jnp.float32).at[:, :SEG_C].set(p["b_seg"])

    w_clf = jnp.zeros((D4, LANES), jnp.float32).at[:, :CLF_TOTAL].set(p["w_clf"])
    b_clf = jnp.zeros((1, LANES), jnp.float32).at[:, :CLF_TOTAL].set(p["b_clf"])

    b_att = jnp.broadcast_to(p["b_att"].reshape(T, 1, 1), (T, BP, 1)).reshape(T * BP, 1)

    return {
        "wih": pack_w(p["wih_f"], p["wih_b"]),
        "bih": pack_bih(p["bih_f"], p["bih_b"], p["bhh_f"], p["bhh_b"]),
        "whh": pack_w(p["whh_f"], p["whh_b"]),
        "bhh_n": bhh_n,
        "b_att": b_att,
        "w_sa": w_sa, "b_seg": b_seg,
        "w_clf": w_clf, "b_clf": b_clf,
    }


def scan_classification_forward(x, mask, pk):
    """x: (B, T, F) float32, mask: (B, T) float32 (0/1), pk: packed params.
    Returns list of logits [clf_2, clf_2, clf_3, clf_3, clf_3, seg (B,T,5)]."""
    # Pad batch to the 8-sublane tile so every per-step slice inside the kernel
    # is tile-aligned (padded rows have x=0, mask=0 and are sliced off below).
    x_p = jnp.pad(x.astype(jnp.float32), ((0, BP - B), (0, 0), (0, 0)))
    m_p = jnp.pad(mask.astype(jnp.float32), ((0, BP - B), (0, 0)))

    xt = jnp.transpose(x_p, (1, 0, 2))                                        # (T,BP,F)
    # Row t*BP+b carries both the forward input x[b,t] and the backward input x[b,T-1-t].
    x_pack = jnp.concatenate([xt, xt[::-1]], axis=-1).reshape(T * BP, 2 * F)
    mt = jnp.transpose(m_p, (1, 0)).reshape(T * BP, 1)

    vmem = pl.BlockSpec(memory_space=pltpu.MemorySpace.VMEM)
    seg_flat, clf = pl.pallas_call(
        scan_cls_kernel,
        out_shape=(
            jax.ShapeDtypeStruct((T * BP, LANES), jnp.float32),
            jax.ShapeDtypeStruct((BP, LANES), jnp.float32),
        ),
        in_specs=[vmem] * 11,
        out_specs=(vmem, vmem),
    )(
        x_pack, mt, pk["b_att"],
        pk["wih"], pk["bih"], pk["whh"], pk["bhh_n"],
        pk["w_sa"], pk["b_seg"], pk["w_clf"], pk["b_clf"],
    )

    seg_logits = jnp.transpose(
        seg_flat.reshape(T, BP, LANES)[:, :B, :SEG_C], (1, 0, 2))             # (B,T,5)

    outs, off = [], 0
    for n in CLF_SIZES:
        outs.append(clf[:B, off:off + n])
        off += n
    outs.append(seg_logits)          # == clf_head(cat) + [seg_head(...)]
    return outs


def init_params(key):
    ks = jax.random.split(key, 20)
    u = lambda k, shp, s: jax.random.uniform(k, shp, jnp.float32, -s, s)
    sg = 1.0 / (H ** 0.5)
    p = {
        # GRU (pre-transposed): wih (F,3H), whh (H,3H), b (1,3H); gate order [r,z,n]
        "wih_f": u(ks[0], (F, 3 * H), sg), "whh_f": u(ks[1], (H, 3 * H), sg),
        "bih_f": u(ks[2], (1, 3 * H), sg), "bhh_f": u(ks[3], (1, 3 * H), sg),
        "wih_b": u(ks[4], (F, 3 * H), sg), "whh_b": u(ks[5], (H, 3 * H), sg),
        "bih_b": u(ks[6], (1, 3 * H), sg), "bhh_b": u(ks[7], (1, 3 * H), sg),
        # attention: weight (2H,1), per-timestep bias (T,1,1)
        "w_att": u(ks[8], (D2, 1), 1.0 / (D2 ** 0.5)),
        "b_att": u(ks[9], (T, 1, 1), 0.1),
        # seg head Linear(2H, 5)
        "w_seg": u(ks[10], (D2, SEG_C), 1.0 / (D2 ** 0.5)),
        "b_seg": u(ks[11], (1, SEG_C), 1.0 / (D2 ** 0.5)),
        # clf heads fused: Linear(4H, 2+2+3+3+3)
        "w_clf": u(ks[12], (D4, CLF_TOTAL), 1.0 / (D4 ** 0.5)),
        "b_clf": u(ks[13], (1, CLF_TOTAL), 1.0 / (D4 ** 0.5)),
    }
    return p


def reference_forward(x, mask, p):
    """Pure-JAX reference with identical math (for verification)."""
    def gru_dir(wih, bih, whh, bhh, reverse):
        xs = jnp.transpose(x, (1, 0, 2))                   # (T,B,F)
        if reverse:
            xs = xs[::-1]

        def step(h, x_t):
            gi = x_t @ wih + bih[0]
            gh = h @ whh + bhh[0]
            r = jax.nn.sigmoid(gi[:, :H] + gh[:, :H])
            z = jax.nn.sigmoid(gi[:, H:2 * H] + gh[:, H:2 * H])
            n = jnp.tanh(gi[:, 2 * H:] + r * gh[:, 2 * H:])
            h_new = (1.0 - z) * n + z * h
            return h_new, h_new

        _, hs = lax.scan(step, jnp.zeros((x.shape[0], H), jnp.float32), xs)
        if reverse:
            hs = hs[::-1]
        return jnp.transpose(hs, (1, 0, 2))                # (B,T,H)

    hf = gru_dir(p["wih_f"], p["bih_f"], p["whh_f"], p["bhh_f"], False)
    hb = gru_dir(p["wih_b"], p["bih_b"], p["whh_b"], p["bhh_b"], True)
    xo = jnp.concatenate([hf, hb], axis=-1)                # (B,T,2H)

    seg = (xo * mask[:, :, None]) @ p["w_seg"] + p["b_seg"][0]        # (B,T,5)
    max_pool = jnp.max(xo, axis=1)
    eij = jnp.tanh((xo @ p["w_att"])[:, :, 0] + p["b_att"][:, 0, 0][None, :])
    a = jnp.exp(eij) * mask
    a = a / (jnp.sum(a, axis=1, keepdims=True) + 1e-10)
    att_pool = jnp.sum(xo * a[:, :, None], axis=1)
    cat = jnp.concatenate([max_pool, att_pool], axis=1)
    clf = cat @ p["w_clf"] + p["b_clf"][0]

    outs, off = [], 0
    for n in CLF_SIZES:
        outs.append(clf[:, off:off + n])
        off += n
    outs.append(seg)
    return outs


if __name__ == "__main__":
    key = jax.random.PRNGKey(0)
    kp, kx = jax.random.split(key)
    params = init_params(kp)
    packed = pack_params(params)

    x = jax.random.normal(kx, (B, T, F), jnp.float32)
    lengths = jnp.array([T, T - 3], jnp.int32)
    mask = (jnp.arange(T)[None, :] < lengths[:, None]).astype(jnp.float32)   # (B,T)

    outs = scan_classification_forward(x, mask, packed)
    outs = jax.block_until_ready(outs)

    refs = reference_forward(x, mask, params)
    refs = jax.block_until_ready(refs)

    assert len(outs) == len(CLF_SIZES) + 1
    for o, r in zip(outs, refs):
        assert o.shape == r.shape, (o.shape, r.shape)
        assert bool(jnp.all(jnp.isfinite(o)))
        assert float(jnp.max(jnp.abs(o - r))) < 1e-3, float(jnp.max(jnp.abs(o - r)))

    print("KERNEL_OK")
</pallas_src>

<mosaic_0001>
module attributes {stable_mosaic.version = 11 : i64} {
  func.func @scan_cls_kernel(%arg0: memref<64x8xf32, #tpu.memory_space<vmem>>, %arg1: memref<64x1xf32, #tpu.memory_space<vmem>>, %arg2: memref<64x1xf32, #tpu.memory_space<vmem>>, %arg3: memref<8x192xf32, #tpu.memory_space<vmem>>, %arg4: memref<1x192xf32, #tpu.memory_space<vmem>>, %arg5: memref<64x192xf32, #tpu.memory_space<vmem>>, %arg6: memref<1x64xf32, #tpu.memory_space<vmem>>, %arg7: memref<64x128xf32, #tpu.memory_space<vmem>>, %arg8: memref<1x128xf32, #tpu.memory_space<vmem>>, %arg9: memref<128x128xf32, #tpu.memory_space<vmem>>, %arg10: memref<1x128xf32, #tpu.memory_space<vmem>>, %arg11: memref<64x128xf32, #tpu.memory_space<vmem>>, %arg12: memref<8x128xf32, #tpu.memory_space<vmem>>) attributes {dimension_semantics = [], scalar_prefetch = 0 : i64, scratch_operands = 0 : i64, tpu.core_type = #tpu.core_type<tc>} {
    %c0 = arith.constant 0 : index
    %c0_0 = arith.constant 0 : index
    %0 = vector.load %arg5[%c0, %c0_0] : memref<64x192xf32, #tpu.memory_space<vmem>>, vector<64x192xf32>
    %c0_1 = arith.constant 0 : index
    %c0_2 = arith.constant 0 : index
    %1 = vector.load %arg1[%c0_1, %c0_2] : memref<64x1xf32, #tpu.memory_space<vmem>>, vector<64x1xf32>
    %c0_3 = arith.constant 0 : index
    %c0_4 = arith.constant 0 : index
    %2 = vector.load %arg0[%c0_3, %c0_4] : memref<64x8xf32, #tpu.memory_space<vmem>>, vector<64x8xf32>
    %c0_5 = arith.constant 0 : index
    %c0_6 = arith.constant 0 : index
    %3 = vector.load %arg3[%c0_5, %c0_6] : memref<8x192xf32, #tpu.memory_space<vmem>>, vector<8x192xf32>
    %cst = arith.constant dense<0.000000e+00> : vector<64x192xf32>
    %4 = tpu.matmul %2, %3, %cst {dimension_numbers = #tpu.dot_dimension_numbers<[1], [0], [0], [1], [0, 0, 1, 1], [], []>} : vector<64x8xf32>, vector<8x192xf32>, vector<64x192xf32> -> vector<64x192xf32>
    %c0_7 = arith.constant 0 : index
    %c0_8 = arith.constant 0 : index
    %5 = vector.load %arg4[%c0_7, %c0_8] : memref<1x192xf32, #tpu.memory_space<vmem>>, vector<1x192xf32>
    %6 = vector.broadcast %5 : vector<1x192xf32> to vector<64x192xf32>
    %7 = arith.addf %4, %6 : vector<64x192xf32>
    %c0_9 = arith.constant 0 : index
    %c0_10 = arith.constant 0 : index
    %8 = vector.load %arg6[%c0_9, %c0_10] : memref<1x64xf32, #tpu.memory_space<vmem>>, vector<1x64xf32>
    %9 = vector.shape_cast %8 : vector<1x64xf32> to vector<1x64xf32>
    %10 = vector.broadcast %9 : vector<1x64xf32> to vector<8x64xf32>
    %cst_11 = arith.constant 0.000000e+00 : f32
    %11 = vector.broadcast %cst_11 : f32 to vector<8x64xf32>
    %12 = vector.extract_strided_slice %7 {offsets = [0, 0], sizes = [8, 192], strides = [1, 1]} : vector<64x192xf32> to vector<8x192xf32>
    %cst_12 = arith.constant dense<0.000000e+00> : vector<8x192xf32>
    %13 = tpu.matmul %11, %0, %cst_12 {dimension_numbers = #tpu.dot_dimension_numbers<[1], [0], [0], [1], [0, 0, 1, 1], [], []>} : vector<8x64xf32>, vector<64x192xf32>, vector<8x192xf32> -> vector<8x192xf32>
    %14 = vector.extract_strided_slice %12 {offsets = [0, 0], sizes = [8, 128], strides = [1, 1]} : vector<8x192xf32> to vector<8x128xf32>
    %15 = vector.extract_strided_slice %13 {offsets = [0, 0], sizes = [8, 128], strides = [1, 1]} : vector<8x192xf32> to vector<8x128xf32>
    %16 = arith.addf %14, %15 : vector<8x128xf32>
    %17 = arith.negf %16 : vector<8x128xf32>
    %18 = math.exp %17 : vector<8x128xf32>
    %cst_13 = arith.constant 1.000000e+00 : f32
    %19 = vector.broadcast %cst_13 : f32 to vector<8x128xf32>
    %20 = arith.addf %19, %18 : vector<8x128xf32>
    %21 = arith.divf %19, %20 : vector<8x128xf32>
    %22 = vector.extract_strided_slice %21 {offsets = [0, 0], sizes = [8, 64], strides = [1, 1]} : vector<8x128xf32> to vector<8x64xf32>
    %23 = vector.extract_strided_slice %21 {offsets = [0, 64], sizes = [8, 64], strides = [1, 1]} : vector<8x128xf32> to vector<8x64xf32>
    %24 = vector.extract_strided_slice %12 {offsets = [0, 128], sizes = [8, 64], strides = [1, 1]} : vector<8x192xf32> to vector<8x64xf32>
    %25 = vector.extract_strided_slice %13 {offsets = [0, 128], sizes = [8, 64], strides = [1, 1]} : vector<8x192xf32> to vector<8x64xf32>
    %26 = arith.addf %25, %10 : vector<8x64xf32>
    %27 = arith.mulf %22, %26 : vector<8x64xf32>
    %28 = arith.addf %24, %27 : vector<8x64xf32>
    %29 = math.tanh %28 : vector<8x64xf32>
    %cst_14 = arith.constant 1.000000e+00 : f32
    %30 = vector.broadcast %cst_14 : f32 to vector<8x64xf32>
    %31 = arith.subf %30, %23 : vector<8x64xf32>
    %32 = arith.mulf %31, %29 : vector<8x64xf32>
    %33 = arith.mulf %23, %11 : vector<8x64xf32>
    %34 = arith.addf %32, %33 : vector<8x64xf32>
    %35 = vector.extract_strided_slice %7 {offsets = [8, 0], sizes = [8, 192], strides = [1, 1]} : vector<64x192xf32> to vector<8x192xf32>
    %cst_15 = arith.constant dense<0.000000e+00> : vector<8x192xf32>
    %36 = tpu.matmul %34, %0, %cst_15 {dimension_numbers = #tpu.dot_dimension_numbers<[1], [0], [0], [1], [0, 0, 1, 1], [], []>} : vector<8x64xf32>, vector<64x192xf32>, vector<8x192xf32> -> vector<8x192xf32>
    %37 = vector.extract_strided_slice %35 {offsets = [0, 0], sizes = [8, 128], strides = [1, 1]} : vector<8x192xf32> to vector<8x128xf32>
    %38 = vector.extract_strided_slice %36 {offsets = [0, 0], sizes = [8, 128], strides = [1, 1]} : vector<8x192xf32> to vector<8x128xf32>
    %39 = arith.addf %37, %38 : vector<8x128xf32>
    %40 = arith.negf %39 : vector<8x128xf32>
    %41 = math.exp %40 : vector<8x128xf32>
    %cst_16 = arith.constant 1.000000e+00 : f32
    %42 = vector.broadcast %cst_16 : f32 to vector<8x128xf32>
    %43 = arith.addf %42, %41 : vector<8x128xf32>
    %44 = arith.divf %42, %43 : vector<8x128xf32>
    %45 = vector.extract_strided_slice %44 {offsets = [0, 0], sizes = [8, 64], strides = [1, 1]} : vector<8x128xf32> to vector<8x64xf32>
    %46 = vector.extract_strided_slice %44 {offsets = [0, 64], sizes = [8, 64], strides = [1, 1]} : vector<8x128xf32> to vector<8x64xf32>
    %47 = vector.extract_strided_slice %35 {offsets = [0, 128], sizes = [8, 64], strides = [1, 1]} : vector<8x192xf32> to vector<8x64xf32>
    %48 = vector.extract_strided_slice %36 {offsets = [0, 128], sizes = [8, 64], strides = [1, 1]} : vector<8x192xf32> to vector<8x64xf32>
    %49 = arith.addf %48, %10 : vector<8x64xf32>
    %50 = arith.mulf %45, %49 : vector<8x64xf32>
    %51 = arith.addf %47, %50 : vector<8x64xf32>
    %52 = math.tanh %51 : vector<8x64xf32>
    %cst_17 = arith.constant 1.000000e+00 : f32
    %53 = vector.broadcast %cst_17 : f32 to vector<8x64xf32>
    %54 = arith.subf %53, %46 : vector<8x64xf32>
    %55 = arith.mulf %54, %52 : vector<8x64xf32>
    %56 = arith.mulf %46, %34 : vector<8x64xf32>
    %57 = arith.addf %55, %56 : vector<8x64xf32>
    %58 = vector.extract_strided_slice %7 {offsets = [16, 0], sizes = [8, 192], strides = [1, 1]} : vector<64x192xf32> to vector<8x192xf32>
    %cst_18 = arith.constant dense<0.000000e+00> : vector<8x192xf32>
    %59 = tpu.matmul %57, %0, %cst_18 {dimension_numbers = #tpu.dot_dimension_numbers<[1], [0], [0], [1], [0, 0, 1, 1], [], []>} : vector<8x64xf32>, vector<64x192xf32>, vector<8x192xf32> -> vector<8x192xf32>
    %60 = vector.extract_strided_slice %58 {offsets = [0, 0], sizes = [8, 128], strides = [1, 1]} : vector<8x192xf32> to vector<8x128xf32>
    %61 = vector.extract_strided_slice %59 {offsets = [0, 0], sizes = [8, 128], strides = [1, 1]} : vector<8x192xf32> to vector<8x128xf32>
    %62 = arith.addf %60, %61 : vector<8x128xf32>
    %63 = arith.negf %62 : vector<8x128xf32>
    %64 = math.exp %63 : vector<8x128xf32>
    %cst_19 = arith.constant 1.000000e+00 : f32
    %65 = vector.broadcast %cst_19 : f32 to vector<8x128xf32>
    %66 = arith.addf %65, %64 : vector<8x128xf32>
    %67 = arith.divf %65, %66 : vector<8x128xf32>
    %68 = vector.extract_strided_slice %67 {offsets = [0, 0], sizes = [8, 64], strides = [1, 1]} : vector<8x128xf32> to vector<8x64xf32>
    %69 = vector.extract_strided_slice %67 {offsets = [0, 64], sizes = [8, 64], strides = [1, 1]} : vector<8x128xf32> to vector<8x64xf32>
    %70 = vector.extract_strided_slice %58 {offsets = [0, 128], sizes = [8, 64], strides = [1, 1]} : vector<8x192xf32> to vector<8x64xf32>
    %71 = vector.extract_strided_slice %59 {offsets = [0, 128], sizes = [8, 64], strides = [1, 1]} : vector<8x192xf32> to vector<8x64xf32>
    %72 = arith.addf %71, %10 : vector<8x64xf32>
    %73 = arith.mulf %68, %72 : vector<8x64xf32>
    %74 = arith.addf %70, %73 : vector<8x64xf32>
    %75 = math.tanh %74 : vector<8x64xf32>
    %cst_20 = arith.constant 1.000000e+00 : f32
    %76 = vector.broadcast %cst_20 : f32 to vector<8x64xf32>
    %77 = arith.subf %76, %69 : vector<8x64xf32>
    %78 = arith.mulf %77, %75 : vector<8x64xf32>
    %79 = arith.mulf %69, %57 : vector<8x64xf32>
    %80 = arith.addf %78, %79 : vector<8x64xf32>
    %81 = vector.extract_strided_slice %7 {offsets = [24, 0], sizes = [8, 192], strides = [1, 1]} : vector<64x192xf32> to vector<8x192xf32>
    %cst_21 = arith.constant dense<0.000000e+00> : vector<8x192xf32>
    %82 = tpu.matmul %80, %0, %cst_21 {dimension_numbers = #tpu.dot_dimension_numbers<[1], [0], [0], [1], [0, 0, 1, 1], [], []>} : vector<8x64xf32>, vector<64x192xf32>, vector<8x192xf32> -> vector<8x192xf32>
    %83 = vector.extract_strided_slice %81 {offsets = [0, 0], sizes = [8, 128], strides = [1, 1]} : vector<8x192xf32> to vector<8x128xf32>
    %84 = vector.extract_strided_slice %82 {offsets = [0, 0], sizes = [8, 128], strides = [1, 1]} : vector<8x192xf32> to vector<8x128xf32>
    %85 = arith.addf %83, %84 : vector<8x128xf32>
    %86 = arith.negf %85 : vector<8x128xf32>
    %87 = math.exp %86 : vector<8x128xf32>
    %cst_22 = arith.constant 1.000000e+00 : f32
    %88 = vector.broadcast %cst_22 : f32 to vector<8x128xf32>
    %89 = arith.addf %88, %87 : vector<8x128xf32>
    %90 = arith.divf %88, %89 : vector<8x128xf32>
    %91 = vector.extract_strided_slice %90 {offsets = [0, 0], sizes = [8, 64], strides = [1, 1]} : vector<8x128xf32> to vector<8x64xf32>
    %92 = vector.extract_strided_slice %90 {offsets = [0, 64], sizes = [8, 64], strides = [1, 1]} : vector<8x128xf32> to vector<8x64xf32>
    %93 = vector.extract_strided_slice %81 {offsets = [0, 128], sizes = [8, 64], strides = [1, 1]} : vector<8x192xf32> to vector<8x64xf32>
    %94 = vector.extract_strided_slice %82 {offsets = [0, 128], sizes = [8, 64], strides = [1, 1]} : vector<8x192xf32> to vector<8x64xf32>
    %95 = arith.addf %94, %10 : vector<8x64xf32>
    %96 = arith.mulf %91, %95 : vector<8x64xf32>
    %97 = arith.addf %93, %96 : vector<8x64xf32>
    %98 = math.tanh %97 : vector<8x64xf32>
    %cst_23 = arith.constant 1.000000e+00 : f32
    %99 = vector.broadcast %cst_23 : f32 to vector<8x64xf32>
    %100 = arith.subf %99, %92 : vector<8x64xf32>
    %101 = arith.mulf %100, %98 : vector<8x64xf32>
    %102 = arith.mulf %92, %80 : vector<8x64xf32>
    %103 = arith.addf %101, %102 : vector<8x64xf32>
    %104 = vector.extract_strided_slice %7 {offsets = [32, 0], sizes = [8, 192], strides = [1, 1]} : vector<64x192xf32> to vector<8x192xf32>
    %cst_24 = arith.constant dense<0.000000e+00> : vector<8x192xf32>
    %105 = tpu.matmul %103, %0, %cst_24 {dimension_numbers = #tpu.dot_dimension_numbers<[1], [0], [0], [1], [0, 0, 1, 1], [], []>} : vector<8x64xf32>, vector<64x192xf32>, vector<8x192xf32> -> vector<8x192xf32>
    %106 = vector.extract_strided_slice %104 {offsets = [0, 0], sizes = [8, 128], strides = [1, 1]} : vector<8x192xf32> to vector<8x128xf32>
    %107 = vector.extract_strided_slice %105 {offsets = [0, 0], sizes = [8, 128], strides = [1, 1]} : vector<8x192xf32> to vector<8x128xf32>
    %108 = arith.addf %106, %107 : vector<8x128xf32>
    %109 = arith.negf %108 : vector<8x128xf32>
    %110 = math.exp %109 : vector<8x128xf32>
    %cst_25 = arith.constant 1.000000e+00 : f32
    %111 = vector.broadcast %cst_25 : f32 to vector<8x128xf32>
    %112 = arith.addf %111, %110 : vector<8x128xf32>
    %113 = arith.divf %111, %112 : vector<8x128xf32>
    %114 = vector.extract_strided_slice %113 {offsets = [0, 0], sizes = [8, 64], strides = [1, 1]} : vector<8x128xf32> to vector<8x64xf32>
    %115 = vector.extract_strided_slice %113 {offsets = [0, 64], sizes = [8, 64], strides = [1, 1]} : vector<8x128xf32> to vector<8x64xf32>
    %116 = vector.extract_strided_slice %104 {offsets = [0, 128], sizes = [8, 64], strides = [1, 1]} : vector<8x192xf32> to vector<8x64xf32>
    %117 = vector.extract_strided_slice %105 {offsets = [0, 128], sizes = [8, 64], strides = [1, 1]} : vector<8x192xf32> to vector<8x64xf32>
    %118 = arith.addf %117, %10 : vector<8x64xf32>
    %119 = arith.mulf %114, %118 : vector<8x64xf32>
    %120 = arith.addf %116, %119 : vector<8x64xf32>
    %121 = math.tanh %120 : vector<8x64xf32>
    %cst_26 = arith.constant 1.000000e+00 : f32
    %122 = vector.broadcast %cst_26 : f32 to vector<8x64xf32>
    %123 = arith.subf %122, %115 : vector<8x64xf32>
    %124 = arith.mulf %123, %121 : vector<8x64xf32>
    %125 = arith.mulf %115, %103 : vector<8x64xf32>
    %126 = arith.addf %124, %125 : vector<8x64xf32>
    %127 = vector.extract_strided_slice %7 {offsets = [40, 0], sizes = [8, 192], strides = [1, 1]} : vector<64x192xf32> to vector<8x192xf32>
    %cst_27 = arith.constant dense<0.000000e+00> : vector<8x192xf32>
    %128 = tpu.matmul %126, %0, %cst_27 {dimension_numbers = #tpu.dot_dimension_numbers<[1], [0], [0], [1], [0, 0, 1, 1], [], []>} : vector<8x64xf32>, vector<64x192xf32>, vector<8x192xf32> -> vector<8x192xf32>
    %129 = vector.extract_strided_slice %127 {offsets = [0, 0], sizes = [8, 128], strides = [1, 1]} : vector<8x192xf32> to vector<8x128xf32>
    %130 = vector.extract_strided_slice %128 {offsets = [0, 0], sizes = [8, 128], strides = [1, 1]} : vector<8x192xf32> to vector<8x128xf32>
    %131 = arith.addf %129, %130 : vector<8x128xf32>
    %132 = arith.negf %131 : vector<8x128xf32>
    %133 = math.exp %132 : vector<8x128xf32>
    %cst_28 = arith.constant 1.000000e+00 : f32
    %134 = vector.broadcast %cst_28 : f32 to vector<8x128xf32>
    %135 = arith.addf %134, %133 : vector<8x128xf32>
    %136 = arith.divf %134, %135 : vector<8x128xf32>
    %137 = vector.extract_strided_slice %136 {offsets = [0, 0], sizes = [8, 64], strides = [1, 1]} : vector<8x128xf32> to vector<8x64xf32>
    %138 = vector.extract_strided_slice %136 {offsets = [0, 64], sizes = [8, 64], strides = [1, 1]} : vector<8x128xf32> to vector<8x64xf32>
    %139 = vector.extract_strided_slice %127 {offsets = [0, 128], sizes = [8, 64], strides = [1, 1]} : vector<8x192xf32> to vector<8x64xf32>
    %140 = vector.extract_strided_slice %128 {offsets = [0, 128], sizes = [8, 64], strides = [1, 1]} : vector<8x192xf32> to vector<8x64xf32>
    %141 = arith.addf %140, %10 : vector<8x64xf32>
    %142 = arith.mulf %137, %141 : vector<8x64xf32>
    %143 = arith.addf %139, %142 : vector<8x64xf32>
    %144 = math.tanh %143 : vector<8x64xf32>
    %cst_29 = arith.constant 1.000000e+00 : f32
    %145 = vector.broadcast %cst_29 : f32 to vector<8x64xf32>
    %146 = arith.subf %145, %138 : vector<8x64xf32>
    %147 = arith.mulf %146, %144 : vector<8x64xf32>
    %148 = arith.mulf %138, %126 : vector<8x64xf32>
    %149 = arith.addf %147, %148 : vector<8x64xf32>
    %150 = vector.extract_strided_slice %7 {offsets = [48, 0], sizes = [8, 192], strides = [1, 1]} : vector<64x192xf32> to vector<8x192xf32>
    %cst_30 = arith.constant dense<0.000000e+00> : vector<8x192xf32>
    %151 = tpu.matmul %149, %0, %cst_30 {dimension_numbers = #tpu.dot_dimension_numbers<[1], [0], [0], [1], [0, 0, 1, 1], [], []>} : vector<8x64xf32>, vector<64x192xf32>, vector<8x192xf32> -> vector<8x192xf32>
    %152 = vector.extract_strided_slice %150 {offsets = [0, 0], sizes = [8, 128], strides = [1, 1]} : vector<8x192xf32> to vector<8x128xf32>
    %153 = vector.extract_strided_slice %151 {offsets = [0, 0], sizes = [8, 128], strides = [1, 1]} : vector<8x192xf32> to vector<8x128xf32>
    %154 = arith.addf %152, %153 : vector<8x128xf32>
    %155 = arith.negf %154 : vector<8x128xf32>
    %156 = math.exp %155 : vector<8x128xf32>
    %cst_31 = arith.constant 1.000000e+00 : f32
    %157 = vector.broadcast %cst_31 : f32 to vector<8x128xf32>
    %158 = arith.addf %157, %156 : vector<8x128xf32>
    %159 = arith.divf %157, %158 : vector<8x128xf32>
    %160 = vector.extract_strided_slice %159 {offsets = [0, 0], sizes = [8, 64], strides = [1, 1]} : vector<8x128xf32> to vector<8x64xf32>
    %161 = vector.extract_strided_slice %159 {offsets = [0, 64], sizes = [8, 64], strides = [1, 1]} : vector<8x128xf32> to vector<8x64xf32>
    %162 = vector.extract_strided_slice %150 {offsets = [0, 128], sizes = [8, 64], strides = [1, 1]} : vector<8x192xf32> to vector<8x64xf32>
    %163 = vector.extract_strided_slice %151 {offsets = [0, 128], sizes = [8, 64], strides = [1, 1]} : vector<8x192xf32> to vector<8x64xf32>
    %164 = arith.addf %163, %10 : vector<8x64xf32>
    %165 = arith.mulf %160, %164 : vector<8x64xf32>
    %166 = arith.addf %162, %165 : vector<8x64xf32>
    %167 = math.tanh %166 : vector<8x64xf32>
    %cst_32 = arith.constant 1.000000e+00 : f32
    %168 = vector.broadcast %cst_32 : f32 to vector<8x64xf32>
    %169 = arith.subf %168, %161 : vector<8x64xf32>
    %170 = arith.mulf %169, %167 : vector<8x64xf32>
    %171 = arith.mulf %161, %149 : vector<8x64xf32>
    %172 = arith.addf %170, %171 : vector<8x64xf32>
    %173 = vector.extract_strided_slice %7 {offsets = [56, 0], sizes = [8, 192], strides = [1, 1]} : vector<64x192xf32> to vector<8x192xf32>
    %cst_33 = arith.constant dense<0.000000e+00> : vector<8x192xf32>
    %174 = tpu.matmul %172, %0, %cst_33 {dimension_numbers = #tpu.dot_dimension_numbers<[1], [0], [0], [1], [0, 0, 1, 1], [], []>} : vector<8x64xf32>, vector<64x192xf32>, vector<8x192xf32> -> vector<8x192xf32>
    %175 = vector.extract_strided_slice %173 {offsets = [0, 0], sizes = [8, 128], strides = [1, 1]} : vector<8x192xf32> to vector<8x128xf32>
    %176 = vector.extract_strided_slice %174 {offsets = [0, 0], sizes = [8, 128], strides = [1, 1]} : vector<8x192xf32> to vector<8x128xf32>
    %177 = arith.addf %175, %176 : vector<8x128xf32>
    %178 = arith.negf %177 : vector<8x128xf32>
    %179 = math.exp %178 : vector<8x128xf32>
    %cst_34 = arith.constant 1.000000e+00 : f32
    %180 = vector.broadcast %cst_34 : f32 to vector<8x128xf32>
    %181 = arith.addf %180, %179 : vector<8x128xf32>
    %182 = arith.divf %180, %181 : vector<8x128xf32>
    %183 = vector.extract_strided_slice %182 {offsets = [0, 0], sizes = [8, 64], strides = [1, 1]} : vector<8x128xf32> to vector<8x64xf32>
    %184 = vector.extract_strided_slice %182 {offsets = [0, 64], sizes = [8, 64], strides = [1, 1]} : vector<8x128xf32> to vector<8x64xf32>
    %185 = vector.extract_strided_slice %173 {offsets = [0, 128], sizes = [8, 64], strides = [1, 1]} : vector<8x192xf32> to vector<8x64xf32>
    %186 = vector.extract_strided_slice %174 {offsets = [0, 128], sizes = [8, 64], strides = [1, 1]} : vector<8x192xf32> to vector<8x64xf32>
    %187 = arith.addf %186, %10 : vector<8x64xf32>
    %188 = arith.mulf %183, %187 : vector<8x64xf32>
    %189 = arith.addf %185, %188 : vector<8x64xf32>
    %190 = math.tanh %189 : vector<8x64xf32>
    %cst_35 = arith.constant 1.000000e+00 : f32
    %191 = vector.broadcast %cst_35 : f32 to vector<8x64xf32>
    %192 = arith.subf %191, %184 : vector<8x64xf32>
    %193 = arith.mulf %192, %190 : vector<8x64xf32>
    %194 = arith.mulf %184, %172 : vector<8x64xf32>
    %195 = arith.addf %193, %194 : vector<8x64xf32>
    %196 = tpu.iota {dimensions = array<i32: 1>} : vector<8x64xi32>
    %c32_i32 = arith.constant 32 : i32
    %197 = vector.broadcast %c32_i32 : i32 to vector<8x64xi32>
    %198 = arith.cmpi slt, %196, %197 : vector<8x64xi32>
    %199 = arith.select %198, %34, %195 : vector<8x64xi1>, vector<8x64xf32>
    %200 = arith.select %198, %57, %172 : vector<8x64xi1>, vector<8x64xf32>
    %201 = arith.select %198, %80, %149 : vector<8x64xi1>, vector<8x64xf32>
    %202 = arith.select %198, %103, %126 : vector<8x64xi1>, vector<8x64xf32>
    %203 = arith.select %198, %126, %103 : vector<8x64xi1>, vector<8x64xf32>
    %204 = arith.select %198, %149, %80 : vector<8x64xi1>, vector<8x64xf32>
    %205 = arith.select %198, %172, %57 : vector<8x64xi1>, vector<8x64xf32>
    %206 = arith.select %198, %195, %34 : vector<8x64xi1>, vector<8x64xf32>
    %207 = tpu.concatenate %199, %200, %201, %202, %203, %204, %205, %206 in 0 : vector<8x64xf32>, vector<8x64xf32>, vector<8x64xf32>, vector<8x64xf32>, vector<8x64xf32>, vector<8x64xf32>, vector<8x64xf32>, vector<8x64xf32> -> vector<64x64xf32>
    %208 = vector.shape_cast %207 : vector<64x64xf32> to vector<8x8x64xf32>
    %c0_36 = arith.constant 0 : index
    %c0_37 = arith.constant 0 : index
    %209 = vector.load %arg7[%c0_36, %c0_37] : memref<64x128xf32, #tpu.memory_space<vmem>>, vector<64x128xf32>
    %cst_38 = arith.constant dense<0.000000e+00> : vector<64x128xf32>
    %210 = tpu.matmul %207, %209, %cst_38 {dimension_numbers = #tpu.dot_dimension_numbers<[1], [0], [0], [1], [0, 0, 1, 1], [], []>} : vector<64x64xf32>, vector<64x128xf32>, vector<64x128xf32> -> vector<64x128xf32>
    %211 = vector.broadcast %1 : vector<64x1xf32> to vector<64x128xf32>
    %212 = arith.mulf %211, %210 : vector<64x128xf32>
    %c0_39 = arith.constant 0 : index
    %c0_40 = arith.constant 0 : index
    %213 = vector.load %arg8[%c0_39, %c0_40] : memref<1x128xf32, #tpu.memory_space<vmem>>, vector<1x128xf32>
    %214 = vector.broadcast %213 : vector<1x128xf32> to vector<64x128xf32>
    %215 = arith.addf %212, %214 : vector<64x128xf32>
    %c0_41 = arith.constant 0 : index
    %c0_42 = arith.constant 0 : index
    %216 = vector.load %arg11[%c0_41, %c0_42] : memref<64x128xf32, #tpu.memory_space<vmem>>, vector<64x128xf32>
    tpu.vector_store %arg11[%c0_41, %c0_42], %215 {strides = array<i32>} : memref<64x128xf32, #tpu.memory_space<vmem>>, vector<64x128xf32>,
    %217 = vector.extract_strided_slice %210 {offsets = [0, 5], sizes = [64, 1], strides = [1, 1]} : vector<64x128xf32> to vector<64x1xf32>
    %c0_43 = arith.constant 0 : index
    %c0_44 = arith.constant 0 : index
    %218 = vector.load %arg2[%c0_43, %c0_44] : memref<64x1xf32, #tpu.memory_space<vmem>>, vector<64x1xf32>
    %219 = arith.addf %217, %218 : vector<64x1xf32>
    %220 = math.tanh %219 : vector<64x1xf32>
    %221 = math.exp %220 : vector<64x1xf32>
    %222 = arith.mulf %221, %1 : vector<64x1xf32>
    %223 = vector.shape_cast %222 : vector<64x1xf32> to vector<8x8x1xf32>
    %cst_45 = arith.constant dense<0.000000e+00> : vector<8x1xf32>
    %224 = vector.multi_reduction <add>, %223, %cst_45 [0] : vector<8x8x1xf32> to vector<8x1xf32>
    %225 = vector.shape_cast %224 : vector<8x1xf32> to vector<1x8x1xf32>
    %cst_46 = arith.constant 1.000000e-10 : f32
    %226 = vector.broadcast %cst_46 : f32 to vector<1x8x1xf32>
    %227 = arith.addf %225, %226 : vector<1x8x1xf32>
    %228 = vector.broadcast %227 : vector<1x8x1xf32> to vector<8x8x1xf32>
    %229 = arith.divf %223, %228 : vector<8x8x1xf32>
    %230 = vector.broadcast %229 : vector<8x8x1xf32> to vector<8x8x64xf32>
    %231 = arith.mulf %208, %230 : vector<8x8x64xf32>
    %cst_47 = arith.constant dense<0.000000e+00> : vector<8x64xf32>
    %232 = vector.multi_reduction <add>, %231, %cst_47 [0] : vector<8x8x64xf32> to vector<8x64xf32>
    %cst_48 = arith.constant dense<0xFF800000> : vector<8x64xf32>
    %233 = vector.multi_reduction <maximumf>, %208, %cst_48 [0] : vector<8x8x64xf32> to vector<8x64xf32>
    %234 = tpu.concatenate %233, %232 in 1 : vector<8x64xf32>, vector<8x64xf32> -> vector<8x128xf32>
    %c0_49 = arith.constant 0 : index
    %c0_50 = arith.constant 0 : index
    %235 = vector.load %arg9[%c0_49, %c0_50] : memref<128x128xf32, #tpu.memory_space<vmem>>, vector<128x128xf32>
    %cst_51 = arith.constant dense<0.000000e+00> : vector<8x128xf32>
    %236 = tpu.matmul %234, %235, %cst_51 {dimension_numbers = #tpu.dot_dimension_numbers<[1], [0], [0], [1], [0, 0, 1, 1], [], []>} : vector<8x128xf32>, vector<128x128xf32>, vector<8x128xf32> -> vector<8x128xf32>
    %c0_52 = arith.constant 0 : index
    %c0_53 = arith.constant 0 : index
    %237 = vector.load %arg10[%c0_52, %c0_53] : memref<1x128xf32, #tpu.memory_space<vmem>>, vector<1x128xf32>
    %238 = vector.broadcast %237 : vector<1x128xf32> to vector<8x128xf32>
    %239 = arith.addf %236, %238 : vector<8x128xf32>
    %c0_54 = arith.constant 0 : index
    %c0_55 = arith.constant 0 : index
    %240 = vector.load %arg12[%c0_54, %c0_55] : memref<8x128xf32, #tpu.memory_space<vmem>>, vector<8x128xf32>
    tpu.vector_store %arg12[%c0_54, %c0_55], %239 {strides = array<i32>} : memref<8x128xf32, #tpu.memory_space<vmem>>, vector<8x128xf32>,
    return
  }
}

</mosaic_0001>

<llo_original>
// kernel: tpu_custom_call.1
$region0: #{tpu_custom_call.1}
  #allocation0 [shape = 'u32[]', space=smem, size = 0x4, offset = 0x4, fixed_abs, tag = 'smem constant byte address 0x4 - core index']
  #allocation1 [shape = 'u32[144,128]{1,0:T(1,128)}', space=vmem, size = 0x12000, scoped, tag = 'internal scratch']
  %s0 = inlined_call_operand.vmem [shape: f32[64,8], index: 0, kind: input, shape index: {}]
  %s1 = inlined_call_operand.vmem [shape: f32[64,1], index: 1, kind: input, shape index: {}]
  %s2 = inlined_call_operand.vmem [shape: f32[64,1], index: 2, kind: input, shape index: {}]
  %s3 = inlined_call_operand.vmem [shape: f32[8,192], index: 3, kind: input, shape index: {}]
  %s4 = inlined_call_operand.vmem [shape: f32[1,192], index: 4, kind: input, shape index: {}]
  %s5 = inlined_call_operand.vmem [shape: f32[64,192], index: 5, kind: input, shape index: {}]
  %s6 = inlined_call_operand.vmem [shape: f32[1,64], index: 6, kind: input, shape index: {}]
  %s7 = inlined_call_operand.vmem [shape: f32[64,128], index: 7, kind: input, shape index: {}]
  %s8 = inlined_call_operand.vmem [shape: f32[1,128], index: 8, kind: input, shape index: {}]
  %s9 = inlined_call_operand.hbm [shape: f32[128,128], index: 9, kind: input, shape index: {}]
  %s10 = inlined_call_operand.vmem [shape: f32[1,128], index: 10, kind: input, shape index: {}]
  %s11 = inlined_call_operand.hbm [shape: f32[64,128], index: 11, kind: output, shape index: {0}]
  %s12 = inlined_call_operand.hbm [shape: f32[8,128], index: 12, kind: output, shape index: {1}]
  %13 = xla_tuple %s11, %s12
  %s14 = sld [smem:[#allocation0]]
  $region66: #{tpu_custom_call.1} parent=0
    _
  %s16 = ssub.s32 1, %s14
  %s17 = scalar_select 0, %s16, %s14
  $region1: #{tpu_custom_call.1} parent=0
    #allocation2 [shape = 'u8[65536]{0}', space=vmem, size = 0x10000, scoped, tag = 'input window, operand 9, single buffered']
    #allocation3 [shape = 's32[1]{0}', space=sflag, size = 0x4, scoped, tag = 'scoped memory for tpu_custom_call.1']
    #allocation4 [shape = 's32[1]{0}', space=sflag, size = 0x4, scoped, tag = 'scoped memory for tpu_custom_call.1']
    #allocation5 [shape = 'u8[32768]{0}', space=vmem, size = 0x8000, scoped, tag = 'output window, operand 0, single buffered']
    #allocation6 [shape = 'u8[4096]{0}', space=vmem, size = 0x1000, scoped, tag = 'output window, operand 1, single buffered']
    #allocation7 [shape = 's32[1]{0}', space=sflag, size = 0x4, scoped, tag = 'scoped memory for tpu_custom_call.1']
    %18 = vsyncpa [#allocation3], 0
    %19 = vsyncpa [#allocation4], 0
    %20 = vsyncpa [#allocation7], 0
    // Predicated region
    $region2: #{tpu_custom_call.1} parent=1 // pred_check
      _
    $region3: #{tpu_custom_call.1} parent=1 // pred_check_branch
      %22 = sbr.rel (0) target = $region5
    $region4: #{tpu_custom_call.1} parent=1 // pred_region
      _
    $region5: #{tpu_custom_call.1} parent=1 // pred_fallthru
      _
    // Predicated region
    $region6: #{tpu_custom_call.1} parent=1 // pred_check
      _
    $region7: #{tpu_custom_call.1} parent=1 // pred_check_branch
      %24 = sbr.rel (0) target = $region9
    $region8: #{tpu_custom_call.1} parent=1 // pred_region
      _
    $region9: #{tpu_custom_call.1} parent=1 // pred_fallthru
      _
    // Predicated region
    $region10: #{tpu_custom_call.1} parent=1 // pred_check
      _
    $region11: #{tpu_custom_call.1} parent=1 // pred_check_branch
      %26 = sbr.rel (0) target = $region13
    $region12: #{tpu_custom_call.1} parent=1 // pred_region
      _
    $region13: #{tpu_custom_call.1} parent=1 // pred_fallthru
      _
    // Predicated region
    $region14: #{tpu_custom_call.1} parent=1 // pred_check
      _
    $region15: #{tpu_custom_call.1} parent=1 // pred_check_branch
      %28 = sbr.rel (0) target = $region17
    $region16: #{tpu_custom_call.1} parent=1 // pred_region
      _
    $region17: #{tpu_custom_call.1} parent=1 // pred_fallthru
      _
    // Predicated region
    $region18: #{tpu_custom_call.1} parent=1 // pred_check
      _
    $region19: #{tpu_custom_call.1} parent=1 // pred_check_branch
      %30 = sbr.rel (0) target = $region21
    $region20: #{tpu_custom_call.1} parent=1 // pred_region
      _
    $region21: #{tpu_custom_call.1} parent=1 // pred_fallthru
      _
    // Predicated region
    $region22: #{tpu_custom_call.1} parent=1 // pred_check
      _
    $region23: #{tpu_custom_call.1} parent=1 // pred_check_branch
      %32 = sbr.rel (0) target = $region25
    $region24: #{tpu_custom_call.1} parent=1 // pred_region
      _
    $region25: #{tpu_custom_call.1} parent=1 // pred_fallthru
      _
    // Predicated region
    $region26: #{tpu_custom_call.1} parent=1 // pred_check
      _
    $region27: #{tpu_custom_call.1} parent=1 // pred_check_branch
      %34 = sbr.rel (0) target = $region29
    $region28: #{tpu_custom_call.1} parent=1 // pred_region
      _
    $region29: #{tpu_custom_call.1} parent=1 // pred_fallthru
      _
    // Predicated region
    $region30: #{tpu_custom_call.1} parent=1 // pred_check
      _
    $region31: #{tpu_custom_call.1} parent=1 // pred_check_branch
      %36 = sbr.rel (0) target = $region33
    $region32: #{tpu_custom_call.1} parent=1 // pred_region
      _
    $region33: #{tpu_custom_call.1} parent=1 // pred_fallthru
      _
    // Predicated region
    $region34: #{tpu_custom_call.1} parent=1 // pred_check
      _
    $region35: #{tpu_custom_call.1} parent=1 // pred_check_branch
      %38 = sbr.rel (0) target = $region37
    $region36: #{tpu_custom_call.1} parent=1 // pred_region
      _
    $region37: #{tpu_custom_call.1} parent=1 // pred_fallthru
      _
    // Predicated region
    $region38: #{tpu_custom_call.1} parent=1 // pred_check
      _
    $region39: #{tpu_custom_call.1} parent=1 // pred_check_branch
      %40 = sbr.rel (0) target = $region41
    $region40: #{tpu_custom_call.1} parent=1 // pred_region
      %s42 = ssub.s32 2048, 2048
      %43 = vsyncadd [#allocation3], %s42
      %s44 = sshll.u32 [#allocation2], 4
      %s45 = int_to_ptr.vmem [resolvable:$true] %s44
      %50 = dma.hbm_to_vmem [thread:$0]  %s9, 2048, %s45, [#allocation3], 128, 128, 8
    $region41: #{tpu_custom_call.1} parent=1 // pred_fallthru
      _
    // Predicated region
    $region42: #{tpu_custom_call.1} parent=1 // pred_check
      _
    $region43: #{tpu_custom_call.1} parent=1 // pred_check_branch
      %52 = sbr.rel (0) target = $region45
    $region44: #{tpu_custom_call.1} parent=1 // pred_region
      _
    $region45: #{tpu_custom_call.1} parent=1 // pred_fallthru
      _
    // Predicated region
    $region46: #{tpu_custom_call.1} parent=1 // pred_check
      _
    $region47: #{tpu_custom_call.1} parent=1 // pred_check_branch
      %54 = sbr.rel (0) target = $region49
    $region48: #{tpu_custom_call.1} parent=1 // pred_region
      %55 = dma.done [#allocation3], 2048
    $region49: #{tpu_custom_call.1} parent=1 // pred_fallthru
      _
    %v56 = vld [vmem:[%s5] sm:$0xff]
    %v57 = vld [vmem:[%s5 + $0x8] sm:$0xff]
    %v58 = vld [vmem:[%s5 + $0x10] sm:$0xff]
    %v59 = vld [vmem:[%s5 + $0x18] sm:$0xff]
    %v60 = vld [vmem:[%s5 + $0x20] sm:$0xff]
    %v61 = vld [vmem:[%s5 + $0x28] sm:$0xff]
    %v62 = vld [vmem:[%s5 + $0x30] sm:$0xff]
    %v63 = vld [vmem:[%s5 + $0x38] sm:$0xff]
    %v64 = vld [vmem:[%s5 + $0x40] sm:$0xff]
    %v65 = vld [vmem:[%s5 + $0x48] sm:$0xff]
    %v66 = vld [vmem:[%s5 + $0x50] sm:$0xff]
    %v67 = vld [vmem:[%s5 + $0x58] sm:$0xff]
    %v68 = vld [vmem:[%s5 + $0x60] sm:$0xff]
    %v69 = vld [vmem:[%s5 + $0x68] sm:$0xff]
    %v70 = vld [vmem:[%s5 + $0x70] sm:$0xff]
    %v71 = vld [vmem:[%s5 + $0x78] sm:$0xff]
    %v72 = vld [vmem:[%s1] sm:$0xff]
    %v73 = vld [vmem:[%s1 + $0x8] sm:$0xff]
    %v74 = vld [vmem:[%s1 + $0x10] sm:$0xff]
    %v75 = vld [vmem:[%s1 + $0x18] sm:$0xff]
    %v76 = vld [vmem:[%s1 + $0x20] sm:$0xff]
    %v77 = vld [vmem:[%s1 + $0x28] sm:$0xff]
    %v78 = vld [vmem:[%s1 + $0x30] sm:$0xff]
    %v79 = vld [vmem:[%s1 + $0x38] sm:$0xff]
    %v80 = vld [vmem:[%s0] sm:$0xff]
    %v81 = vld [vmem:[%s0 + $0x8] sm:$0xff]
    %v82 = vld [vmem:[%s0 + $0x10] sm:$0xff]
    %v83 = vld [vmem:[%s0 + $0x18] sm:$0xff]
    %v84 = vld [vmem:[%s0 + $0x20] sm:$0xff]
    %v85 = vld [vmem:[%s0 + $0x28] sm:$0xff]
    %v86 = vld [vmem:[%s0 + $0x30] sm:$0xff]
    %v87 = vld [vmem:[%s0 + $0x38] sm:$0xff]
    %v88 = vld [vmem:[%s3] sm:$0xff]
    %v89 = vld [vmem:[%s3 + $0x8] sm:$0xff]
    %v90 = vld [vmem:[%s4] sm:$0x3]
    %v92 = vlaneseq
    %v93 = vshrl.u32 %v92, 7
    %v94 = vsub.s32 0, %v93
    %v95 = vrot.slane %v90, %v94
    %v96 = vlaneseq
    %v97 = vshrl.u32 %v96, 7
    %v98 = vsub.s32 1, %v97
    %v99 = vrot.slane %v90, %v98
    %vm102 = vcmask 64512
    %v104 = vsel %vm102, %v80, 0
    %v107 = vsel %vm102, %v81, 0
    %v110 = vsel %vm102, %v82, 0
    %v113 = vsel %vm102, %v83, 0
    %v116 = vsel %vm102, %v84, 0
    %v119 = vsel %vm102, %v85, 0
    %v122 = vsel %vm102, %v86, 0
    %v125 = vsel %vm102, %v87, 0
    %127 = vmatprep.subr.mxu0 %v89
    %128 = vmatpush1.msra.mxu0 %v88
    %129 = vmatprep.subr.mxu0 0.0
    %130 = vmatpush1.msra.mxu0 0.0
    %131 = vmatprep.subr.mxu0 0.0
    %132 = vmatpush1.msra.mxu0 0.0
    %133 = vmatprep.subr.mxu0 0.0
    %134 = vmatpush1.msra.mxu0 0.0
    %135 = vmatprep.subr.mxu0 0.0
    %136 = vmatpush1.msra.mxu0 0.0
    %137 = vmatprep.subr.mxu0 0.0
    %138 = vmatpush1.msra.mxu0 0.0
    %139 = vmatprep.subr.mxu0 0.0
    %140 = vmatpush1.msra.mxu0 0.0
    %141 = vmatprep.subr.mxu0 0.0
    %142 = vmatpush1.msra.mxu0 0.0
    %143 = vmatprep.subr.mxu0 0.0
    %144 = vmatpush1.msra.mxu0 0.0
    %145 = vmatprep.subr.mxu0 0.0
    %146 = vmatpush1.msra.mxu0 0.0
    %147 = vmatprep.subr.mxu0 0.0
    %148 = vmatpush1.msra.mxu0 0.0
    %149 = vmatprep.subr.mxu0 0.0
    %150 = vmatpush1.msra.mxu0 0.0
    %151 = vmatprep.subr.mxu0 0.0
    %152 = vmatpush1.msra.mxu0 0.0
    %153 = vmatprep.subr.mxu0 0.0
    %154 = vmatpush1.msra.mxu0 0.0
    %155 = vmatprep.subr.mxu0 0.0
    %156 = vmatpush1.msra.mxu0 0.0
    %157 = vmatprep.subr.mxu0 0.0
    %158 = vmatpush1.msra.mxu0 0.0
    %159 = vmatprep.subr.mxu0 0.0
    %160 = vmatpush1.msra.mxu0 0.0
    %161 = vmatprep.subr.mxu0 0.0
    %162 = vmatpush1.msra.mxu0 0.0
    %163 = vmatprep.subr.mxu0 0.0
    %164 = vmatpush1.msra.mxu0 0.0
    %165 = vmatprep.subr.mxu0 0.0
    %166 = vmatpush1.msra.mxu0 0.0
    %167 = vmatprep.subr.mxu0 0.0
    %168 = vmatpush1.msra.mxu0 0.0
    %169 = vmatprep.subr.mxu0 0.0
    %170 = vmatpush1.msra.mxu0 0.0
    %171 = vmatprep.subr.mxu0 0.0
    %172 = vmatpush1.msra.mxu0 0.0
    %173 = vmatprep.subr.mxu0 0.0
    %174 = vmatpush1.msra.mxu0 0.0
    %175 = vmatprep.subr.mxu0 0.0
    %176 = vmatpush1.msra.mxu0 0.0
    %177 = vmatprep.subr.mxu0 0.0
    %178 = vmatpush1.msra.mxu0 0.0
    %179 = vmatprep.subr.mxu0 0.0
    %180 = vmatpush1.msra.mxu0 0.0
    %181 = vmatprep.subr.mxu0 0.0
    %182 = vmatpush1.msra.mxu0 0.0
    %183 = vmatprep.subr.mxu0 0.0
    %184 = vmatpush1.msra.mxu0 0.0
    %185 = vmatprep.subr.mxu0 0.0
    %186 = vmatpush1.msra.mxu0 0.0
    %187 = vmatprep.subr.mxu0 0.0
    %188 = vmatpush1.msra.mxu0 0.0
    %189 = vmatprep.subr.mxu0 0.0
    %190 = vmatpush1.msra.mxu0 0.0
    %191 = vmatprep.mubr.f32.mxu0 0.0
    %192 = vmatmul.mubr.f32.gmra.mrb[0].mxu0 %v104
    %v193 = vpop.f32.mrb[0].mxu0
    %v194 = vadd.f32 %v95, %v193
    %v195 = vpop.f32.mrb[0].mxu0
    %v196 = vadd.f32 %v99, %v195
    %197 = vmatprep.mubr.f32.mxu0 0.0
    %198 = vmatmul.mubr.f32.gmra.mrb[0].mxu0 %v107
    %v199 = vpop.f32.mrb[0].mxu0
    %v200 = vadd.f32 %v95, %v199
    %v201 = vpop.f32.mrb[0].mxu0
    %v202 = vadd.f32 %v99, %v201
    %203 = vmatprep.mubr.f32.mxu0 0.0
    %204 = vmatmul.mubr.f32.gmra.mrb[0].mxu0 %v110
    %v205 = vpop.f32.mrb[0].mxu0
    %v206 = vadd.f32 %v95, %v205
    %v207 = vpop.f32.mrb[0].mxu0
    %v208 = vadd.f32 %v99, %v207
    %209 = vmatprep.mubr.f32.mxu0 0.0
    %210 = vmatmul.mubr.f32.gmra.mrb[0].mxu0 %v113
    %v211 = vpop.f32.mrb[0].mxu0
    %v212 = vadd.f32 %v95, %v211
    %v213 = vpop.f32.mrb[0].mxu0
    %v214 = vadd.f32 %v99, %v213
    %215 = vmatprep.mubr.f32.mxu0 0.0
    %216 = vmatmul.mubr.f32.gmra.mrb[0].mxu0 %v116
    %v217 = vpop.f32.mrb[0].mxu0
    %v218 = vadd.f32 %v95, %v217
    %v219 = vpop.f32.mrb[0].mxu0
    %v220 = vadd.f32 %v99, %v219
    %221 = vmatprep.mubr.f32.mxu0 0.0
    %222 = vmatmul.mubr.f32.gmra.mrb[0].mxu0 %v119
    %v223 = vpop.f32.mrb[0].mxu0
    %v224 = vadd.f32 %v95, %v223
    %v225 = vpop.f32.mrb[0].mxu0
    %v226 = vadd.f32 %v99, %v225
    %227 = vmatprep.mubr.f32.mxu0 0.0
    %228 = vmatmul.mubr.f32.gmra.mrb[0].mxu0 %v122
    %v229 = vpop.f32.mrb[0].mxu0
    %v230 = vadd.f32 %v95, %v229
    %v231 = vpop.f32.mrb[0].mxu0
    %v232 = vadd.f32 %v99, %v231
    %233 = vmatprep.mubr.f32.mxu0 0.0
    %234 = vmatmul.mubr.f32.gmra.mrb[0].mxu0 %v125
    %v235 = vpop.f32.mrb[0].mxu0
    %v236 = vadd.f32 %v95, %v235
    %v237 = vpop.f32.mrb[0].mxu0
    %v238 = vadd.f32 %v99, %v237
    %239 = vdwg.mxu0
    %v240 = vld [vmem:[%s6] sm:$0x1]
    %v242 = vlaneseq
    %v243 = vshrl.u32 %v242, 7
    %v244 = vsub.s32 0, %v243
    %v245 = vrot.slane %v240, %v244
    %vm247 = vcmask 523264
    %v249 = vsel %vm247, 0.0, 0
    %251 = vmatprep.subr.mxu0 %v57
    %252 = vmatpush1.msra.mxu0 %v56
    %253 = vmatprep.subr.mxu0 %v59
    %254 = vmatpush1.msra.mxu0 %v58
    %255 = vmatprep.subr.mxu0 %v61
    %256 = vmatpush1.msra.mxu0 %v60
    %257 = vmatprep.subr.mxu0 %v63
    %258 = vmatpush1.msra.mxu0 %v62
    %259 = vmatprep.subr.mxu0 %v65
    %260 = vmatpush1.msra.mxu0 %v64
    %261 = vmatprep.subr.mxu0 %v67
    %262 = vmatpush1.msra.mxu0 %v66
    %263 = vmatprep.subr.mxu0 %v69
    %264 = vmatpush1.msra.mxu0 %v68
    %265 = vmatprep.subr.mxu0 %v71
    %266 = vmatpush1.msra.mxu0 %v70
    %267 = vmatprep.subr.mxu0 0.0
    %268 = vmatpush1.msra.mxu0 0.0
    %269 = vmatprep.subr.mxu0 0.0
    %270 = vmatpush1.msra.mxu0 0.0
    %271 = vmatprep.subr.mxu0 0.0
    %272 = vmatpush1.msra.mxu0 0.0
    %273 = vmatprep.subr.mxu0 0.0
    %274 = vmatpush1.msra.mxu0 0.0
    %275 = vmatprep.subr.mxu0 0.0
    %276 = vmatpush1.msra.mxu0 0.0
    %277 = vmatprep.subr.mxu0 0.0
    %278 = vmatpush1.msra.mxu0 0.0
    %279 = vmatprep.subr.mxu0 0.0
    %280 = vmatpush1.msra.mxu0 0.0
    %281 = vmatprep.subr.mxu0 0.0
    %282 = vmatpush1.msra.mxu0 0.0
    %283 = vmatprep.subr.mxu0 0.0
    %284 = vmatpush1.msra.mxu0 0.0
    %285 = vmatprep.subr.mxu0 0.0
    %286 = vmatpush1.msra.mxu0 0.0
    %287 = vmatprep.subr.mxu0 0.0
    %288 = vmatpush1.msra.mxu0 0.0
    %289 = vmatprep.subr.mxu0 0.0
    %290 = vmatpush1.msra.mxu0 0.0
    %291 = vmatprep.subr.mxu0 0.0
    %292 = vmatpush1.msra.mxu0 0.0
    %293 = vmatprep.subr.mxu0 0.0
    %294 = vmatpush1.msra.mxu0 0.0
    %295 = vmatprep.subr.mxu0 0.0
    %296 = vmatpush1.msra.mxu0 0.0
    %297 = vmatprep.subr.mxu0 0.0
    %298 = vmatpush1.msra.mxu0 0.0
    %299 = vmatprep.subr.mxu0 0.0
    %300 = vmatpush1.msra.mxu0 0.0
    %301 = vmatprep.subr.mxu0 0.0
    %302 = vmatpush1.msra.mxu0 0.0
    %303 = vmatprep.subr.mxu0 0.0
    %304 = vmatpush1.msra.mxu0 0.0
    %305 = vmatprep.subr.mxu0 0.0
    %306 = vmatpush1.msra.mxu0 0.0
    %307 = vmatprep.subr.mxu0 0.0
    %308 = vmatpush1.msra.mxu0 0.0
    %309 = vmatprep.subr.mxu0 0.0
    %310 = vmatpush1.msra.mxu0 0.0
    %311 = vmatprep.subr.mxu0 0.0
    %312 = vmatpush1.msra.mxu0 0.0
    %313 = vmatprep.subr.mxu0 0.0
    %314 = vmatpush1.msra.mxu0 0.0
    %315 = vmatprep.mubr.f32.mxu0 0.0
    %316 = vmatmul.mubr.f32.gmra.mrb[0].mxu0 %v249
    %v317 = vpop.f32.mrb[0].mxu0
    %v318 = vadd.f32 0.0, %v317
    %v319 = vpop.f32.mrb[0].mxu0
    %v320 = vadd.f32 0.0, %v319
    %321 = vdwg.mxu0
    %v322 = vadd.f32 %v194, %v318
    %v323 = vxor.u32 %v322, 2147483648
    %v324 = vmul.f32 %v323, 1.442695
    %v325 = vpow.pop %v324
    %v326 = vadd.f32 %v325, 1.0
    %v327 = vrcp.pop %v326
    %v328 = vmul.f32 1.0, %v327
    %v329 = vadd.f32 %v320, %v245
    %v330 = vmul.f32 %v328, %v329
    %v331 = vadd.f32 %v196, %v330
    %v332 = vtanh.pop %v331
    %v333 = vsub.f32 1.0, %v328
    %335 = vrot.lane.b32.xlu0 %v332, 64
    %v336 = vpop.permute.xlu0 %335
    %v338 = vmul.f32 %v333, %v336
    %v339 = vmul.f32 %v328, 0.0
    %v340 = vadd.f32 %v338, %v339
    %342 = vrot.lane.b32.xlu0 %v340, 64
    %v343 = vpop.permute.xlu0 %342
    %v344 = vsel %vm247, %v343, 0
    %346 = vmatprep.subr.mxu0 %v57
    %347 = vmatpush1.msra.mxu0 %v56
    %348 = vmatprep.subr.mxu0 %v59
    %349 = vmatpush1.msra.mxu0 %v58
    %350 = vmatprep.subr.mxu0 %v61
    %351 = vmatpush1.msra.mxu0 %v60
    %352 = vmatprep.subr.mxu0 %v63
    %353 = vmatpush1.msra.mxu0 %v62
    %354 = vmatprep.subr.mxu0 %v65
    %355 = vmatpush1.msra.mxu0 %v64
    %356 = vmatprep.subr.mxu0 %v67
    %357 = vmatpush1.msra.mxu0 %v66
    %358 = vmatprep.subr.mxu0 %v69
    %359 = vmatpush1.msra.mxu0 %v68
    %360 = vmatprep.subr.mxu0 %v71
    %361 = vmatpush1.msra.mxu0 %v70
    %362 = vmatprep.subr.mxu0 0.0
    %363 = vmatpush1.msra.mxu0 0.0
    %364 = vmatprep.subr.mxu0 0.0
    %365 = vmatpush1.msra.mxu0 0.0
    %366 = vmatprep.subr.mxu0 0.0
    %367 = vmatpush1.msra.mxu0 0.0
    %368 = vmatprep.subr.mxu0 0.0
    %369 = vmatpush1.msra.mxu0 0.0
    %370 = vmatprep.subr.mxu0 0.0
    %371 = vmatpush1.msra.mxu0 0.0
    %372 = vmatprep.subr.mxu0 0.0
    %373 = vmatpush1.msra.mxu0 0.0
    %374 = vmatprep.subr.mxu0 0.0
    %375 = vmatpush1.msra.mxu0 0.0
    %376 = vmatprep.subr.mxu0 0.0
    %377 = vmatpush1.msra.mxu0 0.0
    %378 = vmatprep.subr.mxu0 0.0
    %379 = vmatpush1.msra.mxu0 0.0
    %380 = vmatprep.subr.mxu0 0.0
    %381 = vmatpush1.msra.mxu0 0.0
    %382 = vmatprep.subr.mxu0 0.0
    %383 = vmatpush1.msra.mxu0 0.0
    %384 = vmatprep.subr.mxu0 0.0
    %385 = vmatpush1.msra.mxu0 0.0
    %386 = vmatprep.subr.mxu0 0.0
    %387 = vmatpush1.msra.mxu0 0.0
    %388 = vmatprep.subr.mxu0 0.0
    %389 = vmatpush1.msra.mxu0 0.0
    %390 = vmatprep.subr.mxu0 0.0
    %391 = vmatpush1.msra.mxu0 0.0
    %392 = vmatprep.subr.mxu0 0.0
    %393 = vmatpush1.msra.mxu0 0.0
    %394 = vmatprep.subr.mxu0 0.0
    %395 = vmatpush1.msra.mxu0 0.0
    %396 = vmatprep.subr.mxu0 0.0
    %397 = vmatpush1.msra.mxu0 0.0
    %398 = vmatprep.subr.mxu0 0.0
    %399 = vmatpush1.msra.mxu0 0.0
    %400 = vmatprep.subr.mxu0 0.0
    %401 = vmatpush1.msra.mxu0 0.0
    %402 = vmatprep.subr.mxu0 0.0
    %403 = vmatpush1.msra.mxu0 0.0
    %404 = vmatprep.subr.mxu0 0.0
    %405 = vmatpush1.msra.mxu0 0.0
    %406 = vmatprep.subr.mxu0 0.0
    %407 = vmatpush1.msra.mxu0 0.0
    %408 = vmatprep.subr.mxu0 0.0
    %409 = vmatpush1.msra.mxu0 0.0
    %410 = vmatprep.mubr.f32.mxu0 0.0
    %411 = vmatmul.mubr.f32.gmra.mrb[0].mxu0 %v344
    %v412 = vpop.f32.mrb[0].mxu0
    %v413 = vadd.f32 0.0, %v412
    %v414 = vpop.f32.mrb[0].mxu0
    %v415 = vadd.f32 0.0, %v414
    %416 = vdwg.mxu0
    %v417 = vadd.f32 %v200, %v413
    %v418 = vxor.u32 %v417, 2147483648
    %v419 = vmul.f32 %v418, 1.442695
    %v420 = vpow.pop %v419
    %v421 = vadd.f32 %v420, 1.0
    %v422 = vrcp.pop %v421
    %v423 = vmul.f32 1.0, %v422
    %v424 = vadd.f32 %v415, %v245
    %v425 = vmul.f32 %v423, %v424
    %v426 = vadd.f32 %v202, %v425
    %v427 = vtanh.pop %v426
    %v428 = vsub.f32 1.0, %v423
    %430 = vrot.lane.b32.xlu0 %v427, 64
    %v431 = vpop.permute.xlu0 %430
    %v433 = vmul.f32 %v428, %v431
    %v434 = vmul.f32 %v423, %v340
    %v435 = vadd.f32 %v433, %v434
    %437 = vrot.lane.b32.xlu0 %v435, 64
    %v438 = vpop.permute.xlu0 %437
    %v439 = vsel %vm247, %v438, 0
    %441 = vmatprep.subr.mxu0 %v57
    %442 = vmatpush1.msra.mxu0 %v56
    %443 = vmatprep.subr.mxu0 %v59
    %444 = vmatpush1.msra.mxu0 %v58
    %445 = vmatprep.subr.mxu0 %v61
    %446 = vmatpush1.msra.mxu0 %v60
    %447 = vmatprep.subr.mxu0 %v63
    %448 = vmatpush1.msra.mxu0 %v62
    %449 = vmatprep.subr.mxu0 %v65
    %450 = vmatpush1.msra.mxu0 %v64
    %451 = vmatprep.subr.mxu0 %v67
    %452 = vmatpush1.msra.mxu0 %v66
    %453 = vmatprep.subr.mxu0 %v69
    %454 = vmatpush1.msra.mxu0 %v68
    %455 = vmatprep.subr.mxu0 %v71
    %456 = vmatpush1.msra.mxu0 %v70
    %457 = vmatprep.subr.mxu0 0.0
    %458 = vmatpush1.msra.mxu0 0.0
    %459 = vmatprep.subr.mxu0 0.0
    %460 = vmatpush1.msra.mxu0 0.0
    %461 = vmatprep.subr.mxu0 0.0
    %462 = vmatpush1.msra.mxu0 0.0
    %463 = vmatprep.subr.mxu0 0.0
    %464 = vmatpush1.msra.mxu0 0.0
    %465 = vmatprep.subr.mxu0 0.0
    %466 = vmatpush1.msra.mxu0 0.0
    %467 = vmatprep.subr.mxu0 0.0
    %468 = vmatpush1.msra.mxu0 0.0
    %469 = vmatprep.subr.mxu0 0.0
    %470 = vmatpush1.msra.mxu0 0.0
    %471 = vmatprep.subr.mxu0 0.0
    %472 = vmatpush1.msra.mxu0 0.0
    %473 = vmatprep.subr.mxu0 0.0
    %474 = vmatpush1.msra.mxu0 0.0
    %475 = vmatprep.subr.mxu0 0.0
    %476 = vmatpush1.msra.mxu0 0.0
    %477 = vmatprep.subr.mxu0 0.0
    %478 = vmatpush1.msra.mxu0 0.0
    %479 = vmatprep.subr.mxu0 0.0
    %480 = vmatpush1.msra.mxu0 0.0
    %481 = vmatprep.subr.mxu0 0.0
    %482 = vmatpush1.msra.mxu0 0.0
    %483 = vmatprep.subr.mxu0 0.0
    %484 = vmatpush1.msra.mxu0 0.0
    %485 = vmatprep.subr.mxu0 0.0
    %486 = vmatpush1.msra.mxu0 0.0
    %487 = vmatprep.subr.mxu0 0.0
    %488 = vmatpush1.msra.mxu0 0.0
    %489 = vmatprep.subr.mxu0 0.0
    %490 = vmatpush1.msra.mxu0 0.0
    %491 = vmatprep.subr.mxu0 0.0
    %492 = vmatpush1.msra.mxu0 0.0
    %493 = vmatprep.subr.mxu0 0.0
    %494 = vmatpush1.msra.mxu0 0.0
    %495 = vmatprep.subr.mxu0 0.0
    %496 = vmatpush1.msra.mxu0 0.0
    %497 = vmatprep.subr.mxu0 0.0
    %498 = vmatpush1.msra.mxu0 0.0
    %499 = vmatprep.subr.mxu0 0.0
    %500 = vmatpush1.msra.mxu0 0.0
    %501 = vmatprep.subr.mxu0 0.0
    %502 = vmatpush1.msra.mxu0 0.0
    %503 = vmatprep.subr.mxu0 0.0
    %504 = vmatpush1.msra.mxu0 0.0
    %505 = vmatprep.mubr.f32.mxu0 0.0
    %506 = vmatmul.mubr.f32.gmra.mrb[0].mxu0 %v439
    %v507 = vpop.f32.mrb[0].mxu0
    %v508 = vadd.f32 0.0, %v507
    %v509 = vpop.f32.mrb[0].mxu0
    %v510 = vadd.f32 0.0, %v509
    %511 = vdwg.mxu0
    %v512 = vadd.f32 %v206, %v508
    %v513 = vxor.u32 %v512, 2147483648
    %v514 = vmul.f32 %v513, 1.442695
    %v515 = vpow.pop %v514
    %v516 = vadd.f32 %v515, 1.0
    %v517 = vrcp.pop %v516
    %v518 = vmul.f32 1.0, %v517
    %v519 = vadd.f32 %v510, %v245
    %v520 = vmul.f32 %v518, %v519
    %v521 = vadd.f32 %v208, %v520
    %v522 = vtanh.pop %v521
    %v523 = vsub.f32 1.0, %v518
    %525 = vrot.lane.b32.xlu0 %v522, 64
    %v526 = vpop.permute.xlu0 %525
    %v528 = vmul.f32 %v523, %v526
    %v529 = vmul.f32 %v518, %v435
    %v530 = vadd.f32 %v528, %v529
    %532 = vrot.lane.b32.xlu0 %v530, 64
    %v533 = vpop.permute.xlu0 %532
    %v534 = vsel %vm247, %v533, 0
    %536 = vmatprep.subr.mxu0 %v57
    %537 = vmatpush1.msra.mxu0 %v56
    %538 = vmatprep.subr.mxu0 %v59
    %539 = vmatpush1.msra.mxu0 %v58
    %540 = vmatprep.subr.mxu0 %v61
    %541 = vmatpush1.msra.mxu0 %v60
    %542 = vmatprep.subr.mxu0 %v63
    %543 = vmatpush1.msra.mxu0 %v62
    %544 = vmatprep.subr.mxu0 %v65
    %545 = vmatpush1.msra.mxu0 %v64
    %546 = vmatprep.subr.mxu0 %v67
    %547 = vmatpush1.msra.mxu0 %v66
    %548 = vmatprep.subr.mxu0 %v69
    %549 = vmatpush1.msra.mxu0 %v68
    %550 = vmatprep.subr.mxu0 %v71
    %551 = vmatpush1.msra.mxu0 %v70
    %552 = vmatprep.subr.mxu0 0.0
    %553 = vmatpush1.msra.mxu0 0.0
    %554 = vmatprep.subr.mxu0 0.0
    %555 = vmatpush1.msra.mxu0 0.0
    %556 = vmatprep.subr.mxu0 0.0
    %557 = vmatpush1.msra.mxu0 0.0
    %558 = vmatprep.subr.mxu0 0.0
    %559 = vmatpush1.msra.mxu0 0.0
    %560 = vmatprep.subr.mxu0 0.0
    %561 = vmatpush1.msra.mxu0 0.0
    %562 = vmatprep.subr.mxu0 0.0
    %563 = vmatpush1.msra.mxu0 0.0
    %564 = vmatprep.subr.mxu0 0.0
    %565 = vmatpush1.msra.mxu0 0.0
    %566 = vmatprep.subr.mxu0 0.0
    %567 = vmatpush1.msra.mxu0 0.0
    %568 = vmatprep.subr.mxu0 0.0
    %569 = vmatpush1.msra.mxu0 0.0
    %570 = vmatprep.subr.mxu0 0.0
    %571 = vmatpush1.msra.mxu0 0.0
    %572 = vmatprep.subr.mxu0 0.0
    %573 = vmatpush1.msra.mxu0 0.0
    %574 = vmatprep.subr.mxu0 0.0
    %575 = vmatpush1.msra.mxu0 0.0
    %576 = vmatprep.subr.mxu0 0.0
    %577 = vmatpush1.msra.mxu0 0.0
    %578 = vmatprep.subr.mxu0 0.0
    %579 = vmatpush1.msra.mxu0 0.0
    %580 = vmatprep.subr.mxu0 0.0
    %581 = vmatpush1.msra.mxu0 0.0
    %582 = vmatprep.subr.mxu0 0.0
    %583 = vmatpush1.msra.mxu0 0.0
    %584 = vmatprep.subr.mxu0 0.0
    %585 = vmatpush1.msra.mxu0 0.0
    %586 = vmatprep.subr.mxu0 0.0
    %587 = vmatpush1.msra.mxu0 0.0
    %588 = vmatprep.subr.mxu0 0.0
    %589 = vmatpush1.msra.mxu0 0.0
    %590 = vmatprep.subr.mxu0 0.0
    %591 = vmatpush1.msra.mxu0 0.0
    %592 = vmatprep.subr.mxu0 0.0
    %593 = vmatpush1.msra.mxu0 0.0
    %594 = vmatprep.subr.mxu0 0.0
    %595 = vmatpush1.msra.mxu0 0.0
    %596 = vmatprep.subr.mxu0 0.0
    %597 = vmatpush1.msra.mxu0 0.0
    %598 = vmatprep.subr.mxu0 0.0
    %599 = vmatpush1.msra.mxu0 0.0
    %600 = vmatprep.mubr.f32.mxu0 0.0
    %601 = vmatmul.mubr.f32.gmra.mrb[0].mxu0 %v534
    %v602 = vpop.f32.mrb[0].mxu0
    %v603 = vadd.f32 0.0, %v602
    %v604 = vpop.f32.mrb[0].mxu0
    %v605 = vadd.f32 0.0, %v604
    %606 = vdwg.mxu0
    %v607 = vadd.f32 %v212, %v603
    %v608 = vxor.u32 %v607, 2147483648
    %v609 = vmul.f32 %v608, 1.442695
    %v610 = vpow.pop %v609
    %v611 = vadd.f32 %v610, 1.0
    %v612 = vrcp.pop %v611
    %v613 = vmul.f32 1.0, %v612
    %v614 = vadd.f32 %v605, %v245
    %v615 = vmul.f32 %v613, %v614
    %v616 = vadd.f32 %v214, %v615
    %v617 = vtanh.pop %v616
    %v618 = vsub.f32 1.0, %v613
    %620 = vrot.lane.b32.xlu0 %v617, 64
    %v621 = vpop.permute.xlu0 %620
    %v623 = vmul.f32 %v618, %v621
    %v624 = vmul.f32 %v613, %v530
    %v625 = vadd.f32 %v623, %v624
    %627 = vrot.lane.b32.xlu0 %v625, 64
    %v628 = vpop.permute.xlu0 %627
    %v629 = vsel %vm247, %v628, 0
    %631 = vmatprep.subr.mxu0 %v57
    %632 = vmatpush1.msra.mxu0 %v56
    %633 = vmatprep.subr.mxu0 %v59
    %634 = vmatpush1.msra.mxu0 %v58
    %635 = vmatprep.subr.mxu0 %v61
    %636 = vmatpush1.msra.mxu0 %v60
    %637 = vmatprep.subr.mxu0 %v63
    %638 = vmatpush1.msra.mxu0 %v62
    %639 = vmatprep.subr.mxu0 %v65
    %640 = vmatpush1.msra.mxu0 %v64
    %641 = vmatprep.subr.mxu0 %v67
    %642 = vmatpush1.msra.mxu0 %v66
    %643 = vmatprep.subr.mxu0 %v69
    %644 = vmatpush1.msra.mxu0 %v68
    %645 = vmatprep.subr.mxu0 %v71
    %646 = vmatpush1.msra.mxu0 %v70
    %647 = vmatprep.subr.mxu0 0.0
    %648 = vmatpush1.msra.mxu0 0.0
    %649 = vmatprep.subr.mxu0 0.0
    %650 = vmatpush1.msra.mxu0 0.0
    %651 = vmatprep.subr.mxu0 0.0
    %652 = vmatpush1.msra.mxu0 0.0
    %653 = vmatprep.subr.mxu0 0.0
    %654 = vmatpush1.msra.mxu0 0.0
    %655 = vmatprep.subr.mxu0 0.0
    %656 = vmatpush1.msra.mxu0 0.0
    %657 = vmatprep.subr.mxu0 0.0
    %658 = vmatpush1.msra.mxu0 0.0
    %659 = vmatprep.subr.mxu0 0.0
    %660 = vmatpush1.msra.mxu0 0.0
    %661 = vmatprep.subr.mxu0 0.0
    %662 = vmatpush1.msra.mxu0 0.0
    %663 = vmatprep.subr.mxu0 0.0
    %664 = vmatpush1.msra.mxu0 0.0
    %665 = vmatprep.subr.mxu0 0.0
    %666 = vmatpush1.msra.mxu0 0.0
    %667 = vmatprep.subr.mxu0 0.0
    %668 = vmatpush1.msra.mxu0 0.0
    %669 = vmatprep.subr.mxu0 0.0
    %670 = vmatpush1.msra.mxu0 0.0
    %671 = vmatprep.subr.mxu0 0.0
    %672 = vmatpush1.msra.mxu0 0.0
    %673 = vmatprep.subr.mxu0 0.0
    %674 = vmatpush1.msra.mxu0 0.0
    %675 = vmatprep.subr.mxu0 0.0
    %676 = vmatpush1.msra.mxu0 0.0
    %677 = vmatprep.subr.mxu0 0.0
    %678 = vmatpush1.msra.mxu0 0.0
    %679 = vmatprep.subr.mxu0 0.0
    %680 = vmatpush1.msra.mxu0 0.0
    %681 = vmatprep.subr.mxu0 0.0
    %682 = vmatpush1.msra.mxu0 0.0
    %683 = vmatprep.subr.mxu0 0.0
    %684 = vmatpush1.msra.mxu0 0.0
    %685 = vmatprep.subr.mxu0 0.0
    %686 = vmatpush1.msra.mxu0 0.0
    %687 = vmatprep.subr.mxu0 0.0
    %688 = vmatpush1.msra.mxu0 0.0
    %689 = vmatprep.subr.mxu0 0.0
    %690 = vmatpush1.msra.mxu0 0.0
    %691 = vmatprep.subr.mxu0 0.0
    %692 = vmatpush1.msra.mxu0 0.0
    %693 = vmatprep.subr.mxu0 0.0
    %694 = vmatpush1.msra.mxu0 0.0
    %695 = vmatprep.mubr.f32.mxu0 0.0
    %696 = vmatmul.mubr.f32.gmra.mrb[0].mxu0 %v629
    %v697 = vpop.f32.mrb[0].mxu0
    %v698 = vadd.f32 0.0, %v697
    %v699 = vpop.f32.mrb[0].mxu0
    %v700 = vadd.f32 0.0, %v699
    %701 = vdwg.mxu0
    %v702 = vadd.f32 %v218, %v698
    %v703 = vxor.u32 %v702, 2147483648
    %v704 = vmul.f32 %v703, 1.442695
    %v705 = vpow.pop %v704
    %v706 = vadd.f32 %v705, 1.0
    %v707 = vrcp.pop %v706
    %v708 = vmul.f32 1.0, %v707
    %v709 = vadd.f32 %v700, %v245
    %v710 = vmul.f32 %v708, %v709
    %v711 = vadd.f32 %v220, %v710
    %v712 = vtanh.pop %v711
    %v713 = vsub.f32 1.0, %v708
    %715 = vrot.lane.b32.xlu0 %v712, 64
    %v716 = vpop.permute.xlu0 %715
    %v718 = vmul.f32 %v713, %v716
    %v719 = vmul.f32 %v708, %v625
    %v720 = vadd.f32 %v718, %v719
    %722 = vrot.lane.b32.xlu0 %v720, 64
    %v723 = vpop.permute.xlu0 %722
    %v724 = vsel %vm247, %v723, 0
    %726 = vmatprep.subr.mxu0 %v57
    %727 = vmatpush1.msra.mxu0 %v56
    %728 = vmatprep.subr.mxu0 %v59
    %729 = vmatpush1.msra.mxu0 %v58
    %730 = vmatprep.subr.mxu0 %v61
    %731 = vmatpush1.msra.mxu0 %v60
    %732 = vmatprep.subr.mxu0 %v63
    %733 = vmatpush1.msra.mxu0 %v62
    %734 = vmatprep.subr.mxu0 %v65
    %735 = vmatpush1.msra.mxu0 %v64
    %736 = vmatprep.subr.mxu0 %v67
    %737 = vmatpush1.msra.mxu0 %v66
    %738 = vmatprep.subr.mxu0 %v69
    %739 = vmatpush1.msra.mxu0 %v68
    %740 = vmatprep.subr.mxu0 %v71
    %741 = vmatpush1.msra.mxu0 %v70
    %742 = vmatprep.subr.mxu0 0.0
    %743 = vmatpush1.msra.mxu0 0.0
    %744 = vmatprep.subr.mxu0 0.0
    %745 = vmatpush1.msra.mxu0 0.0
    %746 = vmatprep.subr.mxu0 0.0
    %747 = vmatpush1.msra.mxu0 0.0
    %748 = vmatprep.subr.mxu0 0.0
    %749 = vmatpush1.msra.mxu0 0.0
    %750 = vmatprep.subr.mxu0 0.0
    %751 = vmatpush1.msra.mxu0 0.0
    %752 = vmatprep.subr.mxu0 0.0
    %753 = vmatpush1.msra.mxu0 0.0
    %754 = vmatprep.subr.mxu0 0.0
    %755 = vmatpush1.msra.mxu0 0.0
    %756 = vmatprep.subr.mxu0 0.0
    %757 = vmatpush1.msra.mxu0 0.0
    %758 = vmatprep.subr.mxu0 0.0
    %759 = vmatpush1.msra.mxu0 0.0
    %760 = vmatprep.subr.mxu0 0.0
    %761 = vmatpush1.msra.mxu0 0.0
    %762 = vmatprep.subr.mxu0 0.0
    %763 = vmatpush1.msra.mxu0 0.0
    %764 = vmatprep.subr.mxu0 0.0
    %765 = vmatpush1.msra.mxu0 0.0
    %766 = vmatprep.subr.mxu0 0.0
    %767 = vmatpush1.msra.mxu0 0.0
    %768 = vmatprep.subr.mxu0 0.0
    %769 = vmatpush1.msra.mxu0 0.0
    %770 = vmatprep.subr.mxu0 0.0
    %771 = vmatpush1.msra.mxu0 0.0
    %772 = vmatprep.subr.mxu0 0.0
    %773 = vmatpush1.msra.mxu0 0.0
    %774 = vmatprep.subr.mxu0 0.0
    %775 = vmatpush1.msra.mxu0 0.0
    %776 = vmatprep.subr.mxu0 0.0
    %777 = vmatpush1.msra.mxu0 0.0
    %778 = vmatprep.subr.mxu0 0.0
    %779 = vmatpush1.msra.mxu0 0.0
    %780 = vmatprep.subr.mxu0 0.0
    %781 = vmatpush1.msra.mxu0 0.0
    %782 = vmatprep.subr.mxu0 0.0
    %783 = vmatpush1.msra.mxu0 0.0
    %784 = vmatprep.subr.mxu0 0.0
    %785 = vmatpush1.msra.mxu0 0.0
    %786 = vmatprep.subr.mxu0 0.0
    %787 = vmatpush1.msra.mxu0 0.0
    %788 = vmatprep.subr.mxu0 0.0
    %789 = vmatpush1.msra.mxu0 0.0
    %790 = vmatprep.mubr.f32.mxu0 0.0
    %791 = vmatmul.mubr.f32.gmra.mrb[0].mxu0 %v724
    %v792 = vpop.f32.mrb[0].mxu0
    %v793 = vadd.f32 0.0, %v792
    %v794 = vpop.f32.mrb[0].mxu0
    %v795 = vadd.f32 0.0, %v794
    %796 = vdwg.mxu0
    %v797 = vadd.f32 %v224, %v793
    %v798 = vxor.u32 %v797, 2147483648
    %v799 = vmul.f32 %v798, 1.442695
    %v800 = vpow.pop %v799
    %v801 = vadd.f32 %v800, 1.0
    %v802 = vrcp.pop %v801
    %v803 = vmul.f32 1.0, %v802
    %v804 = vadd.f32 %v795, %v245
    %v805 = vmul.f32 %v803, %v804
    %v806 = vadd.f32 %v226, %v805
    %v807 = vtanh.pop %v806
    %v808 = vsub.f32 1.0, %v803
    %810 = vrot.lane.b32.xlu0 %v807, 64
    %v811 = vpop.permute.xlu0 %810
    %v813 = vmul.f32 %v808, %v811
    %v814 = vmul.f32 %v803, %v720
    %v815 = vadd.f32 %v813, %v814
    %817 = vrot.lane.b32.xlu0 %v815, 64
    %v818 = vpop.permute.xlu0 %817
    %v819 = vsel %vm247, %v818, 0
    %821 = vmatprep.subr.mxu0 %v57
    %822 = vmatpush1.msra.mxu0 %v56
    %823 = vmatprep.subr.mxu0 %v59
    %824 = vmatpush1.msra.mxu0 %v58
    %825 = vmatprep.subr.mxu0 %v61
    %826 = vmatpush1.msra.mxu0 %v60
    %827 = vmatprep.subr.mxu0 %v63
    %828 = vmatpush1.msra.mxu0 %v62
    %829 = vmatprep.subr.mxu0 %v65
    %830 = vmatpush1.msra.mxu0 %v64
    %831 = vmatprep.subr.mxu0 %v67
    %832 = vmatpush1.msra.mxu0 %v66
    %833 = vmatprep.subr.mxu0 %v69
    %834 = vmatpush1.msra.mxu0 %v68
    %835 = vmatprep.subr.mxu0 %v71
    %836 = vmatpush1.msra.mxu0 %v70
    %837 = vmatprep.subr.mxu0 0.0
    %838 = vmatpush1.msra.mxu0 0.0
    %839 = vmatprep.subr.mxu0 0.0
    %840 = vmatpush1.msra.mxu0 0.0
    %841 = vmatprep.subr.mxu0 0.0
    %842 = vmatpush1.msra.mxu0 0.0
    %843 = vmatprep.subr.mxu0 0.0
    %844 = vmatpush1.msra.mxu0 0.0
    %845 = vmatprep.subr.mxu0 0.0
    %846 = vmatpush1.msra.mxu0 0.0
    %847 = vmatprep.subr.mxu0 0.0
    %848 = vmatpush1.msra.mxu0 0.0
    %849 = vmatprep.subr.mxu0 0.0
    %850 = vmatpush1.msra.mxu0 0.0
    %851 = vmatprep.subr.mxu0 0.0
    %852 = vmatpush1.msra.mxu0 0.0
    %853 = vmatprep.subr.mxu0 0.0
    %854 = vmatpush1.msra.mxu0 0.0
    %855 = vmatprep.subr.mxu0 0.0
    %856 = vmatpush1.msra.mxu0 0.0
    %857 = vmatprep.subr.mxu0 0.0
    %858 = vmatpush1.msra.mxu0 0.0
    %859 = vmatprep.subr.mxu0 0.0
    %860 = vmatpush1.msra.mxu0 0.0
    %861 = vmatprep.subr.mxu0 0.0
    %862 = vmatpush1.msra.mxu0 0.0
    %863 = vmatprep.subr.mxu0 0.0
    %864 = vmatpush1.msra.mxu0 0.0
    %865 = vmatprep.subr.mxu0 0.0
    %866 = vmatpush1.msra.mxu0 0.0
    %867 = vmatprep.subr.mxu0 0.0
    %868 = vmatpush1.msra.mxu0 0.0
    %869 = vmatprep.subr.mxu0 0.0
    %870 = vmatpush1.msra.mxu0 0.0
    %871 = vmatprep.subr.mxu0 0.0
    %872 = vmatpush1.msra.mxu0 0.0
    %873 = vmatprep.subr.mxu0 0.0
    %874 = vmatpush1.msra.mxu0 0.0
    %875 = vmatprep.subr.mxu0 0.0
    %876 = vmatpush1.msra.mxu0 0.0
    %877 = vmatprep.subr.mxu0 0.0
    %878 = vmatpush1.msra.mxu0 0.0
    %879 = vmatprep.subr.mxu0 0.0
    %880 = vmatpush1.msra.mxu0 0.0
    %881 = vmatprep.subr.mxu0 0.0
    %882 = vmatpush1.msra.mxu0 0.0
    %883 = vmatprep.subr.mxu0 0.0
    %884 = vmatpush1.msra.mxu0 0.0
    %885 = vmatprep.mubr.f32.mxu0 0.0
    %886 = vmatmul.mubr.f32.gmra.mrb[0].mxu0 %v819
    %v887 = vpop.f32.mrb[0].mxu0
    %v888 = vadd.f32 0.0, %v887
    %v889 = vpop.f32.mrb[0].mxu0
    %v890 = vadd.f32 0.0, %v889
    %891 = vdwg.mxu0
    %v892 = vadd.f32 %v230, %v888
    %v893 = vxor.u32 %v892, 2147483648
    %v894 = vmul.f32 %v893, 1.442695
    %v895 = vpow.pop %v894
    %v896 = vadd.f32 %v895, 1.0
    %v897 = vrcp.pop %v896
    %v898 = vmul.f32 1.0, %v897
    %v899 = vadd.f32 %v890, %v245
    %v900 = vmul.f32 %v898, %v899
    %v901 = vadd.f32 %v232, %v900
    %v902 = vtanh.pop %v901
    %v903 = vsub.f32 1.0, %v898
    %905 = vrot.lane.b32.xlu0 %v902, 64
    %v906 = vpop.permute.xlu0 %905
    %v908 = vmul.f32 %v903, %v906
    %v909 = vmul.f32 %v898, %v815
    %v910 = vadd.f32 %v908, %v909
    %912 = vrot.lane.b32.xlu0 %v910, 64
    %v913 = vpop.permute.xlu0 %912
    %v914 = vsel %vm247, %v913, 0
    %916 = vmatprep.subr.mxu0 %v57
    %917 = vmatpush1.msra.mxu0 %v56
    %918 = vmatprep.subr.mxu0 %v59
    %919 = vmatpush1.msra.mxu0 %v58
    %920 = vmatprep.subr.mxu0 %v61
    %921 = vmatpush1.msra.mxu0 %v60
    %922 = vmatprep.subr.mxu0 %v63
    %923 = vmatpush1.msra.mxu0 %v62
    %924 = vmatprep.subr.mxu0 %v65
    %925 = vmatpush1.msra.mxu0 %v64
    %926 = vmatprep.subr.mxu0 %v67
    %927 = vmatpush1.msra.mxu0 %v66
    %928 = vmatprep.subr.mxu0 %v69
    %929 = vmatpush1.msra.mxu0 %v68
    %930 = vmatprep.subr.mxu0 %v71
    %931 = vmatpush1.msra.mxu0 %v70
    %932 = vmatprep.subr.mxu0 0.0
    %933 = vmatpush1.msra.mxu0 0.0
    %934 = vmatprep.subr.mxu0 0.0
    %935 = vmatpush1.msra.mxu0 0.0
    %936 = vmatprep.subr.mxu0 0.0
    %937 = vmatpush1.msra.mxu0 0.0
    %938 = vmatprep.subr.mxu0 0.0
    %939 = vmatpush1.msra.mxu0 0.0
    %940 = vmatprep.subr.mxu0 0.0
    %941 = vmatpush1.msra.mxu0 0.0
    %942 = vmatprep.subr.mxu0 0.0
    %943 = vmatpush1.msra.mxu0 0.0
    %944 = vmatprep.subr.mxu0 0.0
    %945 = vmatpush1.msra.mxu0 0.0
    %946 = vmatprep.subr.mxu0 0.0
    %947 = vmatpush1.msra.mxu0 0.0
    %948 = vmatprep.subr.mxu0 0.0
    %949 = vmatpush1.msra.mxu0 0.0
    %950 = vmatprep.subr.mxu0 0.0
    %951 = vmatpush1.msra.mxu0 0.0
    %952 = vmatprep.subr.mxu0 0.0
    %953 = vmatpush1.msra.mxu0 0.0
    %954 = vmatprep.subr.mxu0 0.0
    %955 = vmatpush1.msra.mxu0 0.0
    %956 = vmatprep.subr.mxu0 0.0
    %957 = vmatpush1.msra.mxu0 0.0
    %958 = vmatprep.subr.mxu0 0.0
    %959 = vmatpush1.msra.mxu0 0.0
    %960 = vmatprep.subr.mxu0 0.0
    %961 = vmatpush1.msra.mxu0 0.0
    %962 = vmatprep.subr.mxu0 0.0
    %963 = vmatpush1.msra.mxu0 0.0
    %964 = vmatprep.subr.mxu0 0.0
    %965 = vmatpush1.msra.mxu0 0.0
    %966 = vmatprep.subr.mxu0 0.0
    %967 = vmatpush1.msra.mxu0 0.0
    %968 = vmatprep.subr.mxu0 0.0
    %969 = vmatpush1.msra.mxu0 0.0
    %970 = vmatprep.subr.mxu0 0.0
    %971 = vmatpush1.msra.mxu0 0.0
    %972 = vmatprep.subr.mxu0 0.0
    %973 = vmatpush1.msra.mxu0 0.0
    %974 = vmatprep.subr.mxu0 0.0
    %975 = vmatpush1.msra.mxu0 0.0
    %976 = vmatprep.subr.mxu0 0.0
    %977 = vmatpush1.msra.mxu0 0.0
    %978 = vmatprep.subr.mxu0 0.0
    %979 = vmatpush1.msra.mxu0 0.0
    %980 = vmatprep.mubr.f32.mxu0 0.0
    %981 = vmatmul.mubr.f32.gmra.mrb[0].mxu0 %v914
    %v982 = vpop.f32.mrb[0].mxu0
    %v983 = vadd.f32 0.0, %v982
    %v984 = vpop.f32.mrb[0].mxu0
    %v985 = vadd.f32 0.0, %v984
    %986 = vdwg.mxu0
    %v987 = vadd.f32 %v236, %v983
    %v988 = vxor.u32 %v987, 2147483648
    %v989 = vmul.f32 %v988, 1.442695
    %v990 = vpow.pop %v989
    %v991 = vadd.f32 %v990, 1.0
    %v992 = vrcp.pop %v991
    %v993 = vmul.f32 1.0, %v992
    %v994 = vadd.f32 %v985, %v245
    %v995 = vmul.f32 %v993, %v994
    %v996 = vadd.f32 %v238, %v995
    %v997 = vtanh.pop %v996
    %v998 = vsub.f32 1.0, %v993
    %1000 = vrot.lane.b32.xlu0 %v997, 64
    %v1001 = vpop.permute.xlu0 %1000
    %v1003 = vmul.f32 %v998, %v1001
    %v1004 = vmul.f32 %v993, %v910
    %v1005 = vadd.f32 %v1003, %v1004
    %v1006 = vlaneseq
    %v1007 = vand.u32 %v1006, 127
    %vm1008 = vcmp.lt.s32.totalorder %v1007, 32
    %1011 = vrot.lane.b32.xlu0 %v1005, 64
    %v1012 = vpop.permute.xlu0 %1011
    %v1014 = vsel %vm1008, %v343, %v1012
    %v1017 = vsel %vm1008, %v438, %v913
    %v1020 = vsel %vm1008, %v533, %v818
    %v1023 = vsel %vm1008, %v628, %v723
    %v1024 = vsel %vm1008, %v723, %v628
    %v1025 = vsel %vm1008, %v818, %v533
    %v1026 = vsel %vm1008, %v913, %v438
    %v1027 = vsel %vm1008, %v1012, %v343
    %v1028 = vld [vmem:[%s7] sm:$0xff]
    %v1029 = vld [vmem:[%s7 + $0x8] sm:$0xff]
    %v1030 = vld [vmem:[%s7 + $0x10] sm:$0xff]
    %v1031 = vld [vmem:[%s7 + $0x18] sm:$0xff]
    %v1032 = vld [vmem:[%s7 + $0x20] sm:$0xff]
    %v1033 = vld [vmem:[%s7 + $0x28] sm:$0xff]
    %v1034 = vld [vmem:[%s7 + $0x30] sm:$0xff]
    %v1035 = vld [vmem:[%s7 + $0x38] sm:$0xff]
    %v1037 = vsel %vm247, %v1014, 0
    %v1040 = vsel %vm247, %v1017, 0
    %v1043 = vsel %vm247, %v1020, 0
    %v1046 = vsel %vm247, %v1023, 0
    %v1049 = vsel %vm247, %v1024, 0
    %v1052 = vsel %vm247, %v1025, 0
    %v1055 = vsel %vm247, %v1026, 0
    %v1058 = vsel %vm247, %v1027, 0
    %1060 = vmatprep.subr.mxu0 0.0
    %1061 = vmatpush1.msra.mxu0 %v1028
    %1062 = vmatprep.subr.mxu0 0.0
    %1063 = vmatpush1.msra.mxu0 %v1029
    %1064 = vmatprep.subr.mxu0 0.0
    %1065 = vmatpush1.msra.mxu0 %v1030
    %1066 = vmatprep.subr.mxu0 0.0
    %1067 = vmatpush1.msra.mxu0 %v1031
    %1068 = vmatprep.subr.mxu0 0.0
    %1069 = vmatpush1.msra.mxu0 %v1032
    %1070 = vmatprep.subr.mxu0 0.0
    %1071 = vmatpush1.msra.mxu0 %v1033
    %1072 = vmatprep.subr.mxu0 0.0
    %1073 = vmatpush1.msra.mxu0 %v1034
    %1074 = vmatprep.subr.mxu0 0.0
    %1075 = vmatpush1.msra.mxu0 %v1035
    %1076 = vmatprep.subr.mxu0 0.0
    %1077 = vmatpush1.msra.mxu0 0.0
    %1078 = vmatprep.subr.mxu0 0.0
    %1079 = vmatpush1.msra.mxu0 0.0
    %1080 = vmatprep.subr.mxu0 0.0
    %1081 = vmatpush1.msra.mxu0 0.0
    %1082 = vmatprep.subr.mxu0 0.0
    %1083 = vmatpush1.msra.mxu0 0.0
    %1084 = vmatprep.subr.mxu0 0.0
    %1085 = vmatpush1.msra.mxu0 0.0
    %1086 = vmatprep.subr.mxu0 0.0
    %1087 = vmatpush1.msra.mxu0 0.0
    %1088 = vmatprep.subr.mxu0 0.0
    %1089 = vmatpush1.msra.mxu0 0.0
    %1090 = vmatprep.subr.mxu0 0.0
    %1091 = vmatpush1.msra.mxu0 0.0
    %1092 = vmatprep.subr.mxu0 0.0
    %1093 = vmatpush1.msra.mxu0 0.0
    %1094 = vmatprep.subr.mxu0 0.0
    %1095 = vmatpush1.msra.mxu0 0.0
    %1096 = vmatprep.subr.mxu0 0.0
    %1097 = vmatpush1.msra.mxu0 0.0
    %1098 = vmatprep.subr.mxu0 0.0
    %1099 = vmatpush1.msra.mxu0 0.0
    %1100 = vmatprep.subr.mxu0 0.0
    %1101 = vmatpush1.msra.mxu0 0.0
    %1102 = vmatprep.subr.mxu0 0.0
    %1103 = vmatpush1.msra.mxu0 0.0
    %1104 = vmatprep.subr.mxu0 0.0
    %1105 = vmatpush1.msra.mxu0 0.0
    %1106 = vmatprep.subr.mxu0 0.0
    %1107 = vmatpush1.msra.mxu0 0.0
    %1108 = vmatprep.subr.mxu0 0.0
    %1109 = vmatpush1.msra.mxu0 0.0
    %1110 = vmatprep.subr.mxu0 0.0
    %1111 = vmatpush1.msra.mxu0 0.0
    %1112 = vmatprep.subr.mxu0 0.0
    %1113 = vmatpush1.msra.mxu0 0.0
    %1114 = vmatprep.subr.mxu0 0.0
    %1115 = vmatpush1.msra.mxu0 0.0
    %1116 = vmatprep.subr.mxu0 0.0
    %1117 = vmatpush1.msra.mxu0 0.0
    %1118 = vmatprep.subr.mxu0 0.0
    %1119 = vmatpush1.msra.mxu0 0.0
    %1120 = vmatprep.subr.mxu0 0.0
    %1121 = vmatpush1.msra.mxu0 0.0
    %1122 = vmatprep.subr.mxu0 0.0
    %1123 = vmatpush1.msra.mxu0 0.0
    %1124 = vmatprep.mubr.f32.mxu0 0.0
    %1125 = vmatmul.mubr.f32.gmra.mrb[0].mxu0 %v1037
    %v1126 = vpop.f32.mrb[0].mxu0
    %v1127 = vadd.f32 0.0, %v1126
    %v1128 = vpop.f32.mrb[0].mxu0
    %1129 = vmatprep.mubr.f32.mxu0 0.0
    %1130 = vmatmul.mubr.f32.gmra.mrb[0].mxu0 %v1040
    %v1131 = vpop.f32.mrb[0].mxu0
    %v1132 = vadd.f32 0.0, %v1131
    %v1133 = vpop.f32.mrb[0].mxu0
    %1134 = vmatprep.mubr.f32.mxu0 0.0
    %1135 = vmatmul.mubr.f32.gmra.mrb[0].mxu0 %v1043
    %v1136 = vpop.f32.mrb[0].mxu0
    %v1137 = vadd.f32 0.0, %v1136
    %v1138 = vpop.f32.mrb[0].mxu0
    %1139 = vmatprep.mubr.f32.mxu0 0.0
    %1140 = vmatmul.mubr.f32.gmra.mrb[0].mxu0 %v1046
    %v1141 = vpop.f32.mrb[0].mxu0
    %v1142 = vadd.f32 0.0, %v1141
    %v1143 = vpop.f32.mrb[0].mxu0
    %1144 = vmatprep.mubr.f32.mxu0 0.0
    %1145 = vmatmul.mubr.f32.gmra.mrb[0].mxu0 %v1049
    %v1146 = vpop.f32.mrb[0].mxu0
    %v1147 = vadd.f32 0.0, %v1146
    %v1148 = vpop.f32.mrb[0].mxu0
    %1149 = vmatprep.mubr.f32.mxu0 0.0
    %1150 = vmatmul.mubr.f32.gmra.mrb[0].mxu0 %v1052
    %v1151 = vpop.f32.mrb[0].mxu0
    %v1152 = vadd.f32 0.0, %v1151
    %v1153 = vpop.f32.mrb[0].mxu0
    %1154 = vmatprep.mubr.f32.mxu0 0.0
    %1155 = vmatmul.mubr.f32.gmra.mrb[0].mxu0 %v1055
    %v1156 = vpop.f32.mrb[0].mxu0
    %v1157 = vadd.f32 0.0, %v1156
    %v1158 = vpop.f32.mrb[0].mxu0
    %1159 = vmatprep.mubr.f32.mxu0 0.0
    %1160 = vmatmul.mubr.f32.gmra.mrb[0].mxu0 %v1058
    %v1161 = vpop.f32.mrb[0].mxu0
    %v1162 = vadd.f32 0.0, %v1161
    %v1163 = vpop.f32.mrb[0].mxu0
    %1164 = vdwg.mxu0
    %1166 = vset.pattern.permute.xlu0 0
    %1167 = vperm.xlu0 %1166, %v72
    %v1168 = vpop.permute.xlu0 %1167
    %1171 = vset.pattern.permute.xlu0 0
    %1172 = vperm.xlu0 %1171, %v73
    %v1173 = vpop.permute.xlu0 %1172
    %1176 = vset.pattern.permute.xlu0 0
    %1177 = vperm.xlu0 %1176, %v74
    %v1178 = vpop.permute.xlu0 %1177
    %1181 = vset.pattern.permute.xlu0 0
    %1182 = vperm.xlu0 %1181, %v75
    %v1183 = vpop.permute.xlu0 %1182
    %1186 = vset.pattern.permute.xlu0 0
    %1187 = vperm.xlu0 %1186, %v76
    %v1188 = vpop.permute.xlu0 %1187
    %1191 = vset.pattern.permute.xlu0 0
    %1192 = vperm.xlu0 %1191, %v77
    %v1193 = vpop.permute.xlu0 %1192
    %1196 = vset.pattern.permute.xlu0 0
    %1197 = vperm.xlu0 %1196, %v78
    %v1198 = vpop.permute.xlu0 %1197
    %1201 = vset.pattern.permute.xlu0 0
    %1202 = vperm.xlu0 %1201, %v79
    %v1203 = vpop.permute.xlu0 %1202
    %v1205 = vmul.f32 %v1168, %v1127
    %v1206 = vmul.f32 %v1173, %v1132
    %v1207 = vmul.f32 %v1178, %v1137
    %v1208 = vmul.f32 %v1183, %v1142
    %v1209 = vmul.f32 %v1188, %v1147
    %v1210 = vmul.f32 %v1193, %v1152
    %v1211 = vmul.f32 %v1198, %v1157
    %v1212 = vmul.f32 %v1203, %v1162
    %v1213 = vld [vmem:[%s8] sm:$0x1]
    %v1215 = vlaneseq
    %v1216 = vshrl.u32 %v1215, 7
    %v1217 = vsub.s32 0, %v1216
    %v1218 = vrot.slane %v1213, %v1217
    %v1220 = vadd.f32 %v1205, %v1218
    %v1221 = vadd.f32 %v1206, %v1218
    %v1222 = vadd.f32 %v1207, %v1218
    %v1223 = vadd.f32 %v1208, %v1218
    %v1224 = vadd.f32 %v1209, %v1218
    %v1225 = vadd.f32 %v1210, %v1218
    %v1226 = vadd.f32 %v1211, %v1218
    %v1227 = vadd.f32 %v1212, %v1218
    %1228 = vst [vmem:[#allocation5] sm:$0xff] %v1220
    %1229 = vst [vmem:[#allocation5 + $0x8] sm:$0xff] %v1221
    %1230 = vst [vmem:[#allocation5 + $0x10] sm:$0xff] %v1222
    %1231 = vst [vmem:[#allocation5 + $0x18] sm:$0xff] %v1223
    %1232 = vst [vmem:[#allocation5 + $0x20] sm:$0xff] %v1224
    %1233 = vst [vmem:[#allocation5 + $0x28] sm:$0xff] %v1225
    %1234 = vst [vmem:[#allocation5 + $0x30] sm:$0xff] %v1226
    %1235 = vst [vmem:[#allocation5 + $0x38] sm:$0xff] %v1227
    %v1236 = vld [vmem:[%s2] sm:$0xff]
    %v1237 = vld [vmem:[%s2 + $0x8] sm:$0xff]
    %v1238 = vld [vmem:[%s2 + $0x10] sm:$0xff]
    %v1239 = vld [vmem:[%s2 + $0x18] sm:$0xff]
    %v1240 = vld [vmem:[%s2 + $0x20] sm:$0xff]
    %v1241 = vld [vmem:[%s2 + $0x28] sm:$0xff]
    %v1242 = vld [vmem:[%s2 + $0x30] sm:$0xff]
    %v1243 = vld [vmem:[%s2 + $0x38] sm:$0xff]
    %1252 = vrot.lane.b32.xlu0 %v1236, 5
    %v1253 = vpop.permute.xlu0 %1252
    %1254 = vrot.lane.b32.xlu0 %v1237, 5
    %v1255 = vpop.permute.xlu0 %1254
    %1256 = vrot.lane.b32.xlu0 %v1238, 5
    %v1257 = vpop.permute.xlu0 %1256
    %1258 = vrot.lane.b32.xlu0 %v1239, 5
    %v1259 = vpop.permute.xlu0 %1258
    %1260 = vrot.lane.b32.xlu0 %v1240, 5
    %v1261 = vpop.permute.xlu0 %1260
    %1262 = vrot.lane.b32.xlu0 %v1241, 5
    %v1263 = vpop.permute.xlu0 %1262
    %1264 = vrot.lane.b32.xlu0 %v1242, 5
    %v1265 = vpop.permute.xlu0 %1264
    %1266 = vrot.lane.b32.xlu0 %v1243, 5
    %v1267 = vpop.permute.xlu0 %1266
    %v1276 = vadd.f32 %v1127, %v1253
    %v1277 = vadd.f32 %v1132, %v1255
    %v1278 = vadd.f32 %v1137, %v1257
    %v1279 = vadd.f32 %v1142, %v1259
    %v1280 = vadd.f32 %v1147, %v1261
    %v1281 = vadd.f32 %v1152, %v1263
    %v1282 = vadd.f32 %v1157, %v1265
    %v1283 = vadd.f32 %v1162, %v1267
    %v1284 = vtanh.pop %v1276
    %v1285 = vtanh.pop %v1277
    %v1286 = vtanh.pop %v1278
    %v1287 = vtanh.pop %v1279
    %v1288 = vtanh.pop %v1280
    %v1289 = vtanh.pop %v1281
    %v1290 = vtanh.pop %v1282
    %v1291 = vtanh.pop %v1283
    %v1292 = vmul.f32 %v1284, 1.442695
    %v1293 = vpow.pop %v1292
    %v1294 = vmul.f32 %v1285, 1.442695
    %v1295 = vpow.pop %v1294
    %v1296 = vmul.f32 %v1286, 1.442695
    %v1297 = vpow.pop %v1296
    %v1298 = vmul.f32 %v1287, 1.442695
    %v1299 = vpow.pop %v1298
    %v1300 = vmul.f32 %v1288, 1.442695
    %v1301 = vpow.pop %v1300
    %v1302 = vmul.f32 %v1289, 1.442695
    %v1303 = vpow.pop %v1302
    %v1304 = vmul.f32 %v1290, 1.442695
    %v1305 = vpow.pop %v1304
    %v1306 = vmul.f32 %v1291, 1.442695
    %v1307 = vpow.pop %v1306
    %1308 = vrot.lane.b32.xlu0 %v72, 5
    %v1309 = vpop.permute.xlu0 %1308
    %1310 = vrot.lane.b32.xlu0 %v73, 5
    %v1311 = vpop.permute.xlu0 %1310
    %1312 = vrot.lane.b32.xlu0 %v74, 5
    %v1313 = vpop.permute.xlu0 %1312
    %1314 = vrot.lane.b32.xlu0 %v75, 5
    %v1315 = vpop.permute.xlu0 %1314
    %1316 = vrot.lane.b32.xlu0 %v76, 5
    %v1317 = vpop.permute.xlu0 %1316
    %1318 = vrot.lane.b32.xlu0 %v77, 5
    %v1319 = vpop.permute.xlu0 %1318
    %1320 = vrot.lane.b32.xlu0 %v78, 5
    %v1321 = vpop.permute.xlu0 %1320
    %1322 = vrot.lane.b32.xlu0 %v79, 5
    %v1323 = vpop.permute.xlu0 %1322
    %v1332 = vmul.f32 %v1293, %v1309
    %v1333 = vmul.f32 %v1295, %v1311
    %v1334 = vmul.f32 %v1297, %v1313
    %v1335 = vmul.f32 %v1299, %v1315
    %v1336 = vmul.f32 %v1301, %v1317
    %v1337 = vmul.f32 %v1303, %v1319
    %v1338 = vmul.f32 %v1305, %v1321
    %v1339 = vmul.f32 %v1307, %v1323
    %vm1340 = vcmask 48168
    %v1341 = vsel %vm1340, %v1332, 0.0
    %v1342 = vsel %vm1340, %v1333, 0.0
    %v1343 = vadd.f32 %v1341, %v1342
    %v1344 = vsel %vm1340, %v1334, 0.0
    %v1345 = vadd.f32 %v1343, %v1344
    %v1346 = vsel %vm1340, %v1335, 0.0
    %v1347 = vadd.f32 %v1345, %v1346
    %v1348 = vsel %vm1340, %v1336, 0.0
    %v1349 = vadd.f32 %v1347, %v1348
    %v1350 = vsel %vm1340, %v1337, 0.0
    %v1351 = vadd.f32 %v1349, %v1350
    %v1352 = vsel %vm1340, %v1338, 0.0
    %v1353 = vadd.f32 %v1351, %v1352
    %v1354 = vsel %vm1340, %v1339, 0.0
    %v1355 = vadd.f32 %v1353, %v1354
    %v1356 = vadd.f32 %v1355, 1e-10
    %v1357 = vrcp.pop %v1356
    %v1358 = vmul.f32 %v1332, %v1357
    %v1359 = vmul.f32 %v1333, %v1357
    %v1360 = vmul.f32 %v1334, %v1357
    %v1361 = vmul.f32 %v1335, %v1357
    %v1362 = vmul.f32 %v1336, %v1357
    %v1363 = vmul.f32 %v1337, %v1357
    %v1364 = vmul.f32 %v1338, %v1357
    %v1365 = vmul.f32 %v1339, %v1357
    %1367 = vset.pattern.permute.xlu0 5
    %1368 = vperm.xlu0 %1367, %v1358
    %v1369 = vpop.permute.xlu0 %1368
    %1372 = vset.pattern.permute.xlu0 5
    %1373 = vperm.xlu0 %1372, %v1359
    %v1374 = vpop.permute.xlu0 %1373
    %1377 = vset.pattern.permute.xlu0 5
    %1378 = vperm.xlu0 %1377, %v1360
    %v1379 = vpop.permute.xlu0 %1378
    %1382 = vset.pattern.permute.xlu0 5
    %1383 = vperm.xlu0 %1382, %v1361
    %v1384 = vpop.permute.xlu0 %1383
    %1387 = vset.pattern.permute.xlu0 5
    %1388 = vperm.xlu0 %1387, %v1362
    %v1389 = vpop.permute.xlu0 %1388
    %1392 = vset.pattern.permute.xlu0 5
    %1393 = vperm.xlu0 %1392, %v1363
    %v1394 = vpop.permute.xlu0 %1393
    %1397 = vset.pattern.permute.xlu0 5
    %1398 = vperm.xlu0 %1397, %v1364
    %v1399 = vpop.permute.xlu0 %1398
    %1402 = vset.pattern.permute.xlu0 5
    %1403 = vperm.xlu0 %1402, %v1365
    %v1404 = vpop.permute.xlu0 %1403
    %v1406 = vmul.f32 %v1014, %v1369
    %v1407 = vmul.f32 %v1017, %v1374
    %v1408 = vmul.f32 %v1020, %v1379
    %v1409 = vmul.f32 %v1023, %v1384
    %v1410 = vmul.f32 %v1024, %v1389
    %v1411 = vmul.f32 %v1025, %v1394
    %v1412 = vmul.f32 %v1026, %v1399
    %v1413 = vmul.f32 %v1027, %v1404
    %v1414 = vsel %vm247, %v1406, 0.0
    %v1415 = vsel %vm247, %v1407, 0.0
    %v1416 = vadd.f32 %v1414, %v1415
    %v1417 = vsel %vm247, %v1408, 0.0
    %v1418 = vadd.f32 %v1416, %v1417
    %v1419 = vsel %vm247, %v1409, 0.0
    %v1420 = vadd.f32 %v1418, %v1419
    %v1421 = vsel %vm247, %v1410, 0.0
    %v1422 = vadd.f32 %v1420, %v1421
    %v1423 = vsel %vm247, %v1411, 0.0
    %v1424 = vadd.f32 %v1422, %v1423
    %v1425 = vsel %vm247, %v1412, 0.0
    %v1426 = vadd.f32 %v1424, %v1425
    %v1427 = vsel %vm247, %v1413, 0.0
    %v1428 = vadd.f32 %v1426, %v1427
    %v1429 = vsel %vm247, %v1014, -inf
    %v1430 = vsel %vm247, %v1017, -inf
    %v1431 = vsel %vm247, %v1020, -inf
    %v1432 = vsel %vm247, %v1023, -inf
    %v1433 = vsel %vm247, %v1024, -inf
    %v1434 = vmax.f32 %v1429, %v1433
    %v1435 = vsel %vm247, %v1025, -inf
    %v1436 = vmax.f32 %v1430, %v1435
    %v1437 = vsel %vm247, %v1026, -inf
    %v1438 = vmax.f32 %v1431, %v1437
    %v1439 = vsel %vm247, %v1027, -inf
    %v1440 = vmax.f32 %v1432, %v1439
    %v1441 = vmax.f32 %v1434, %v1436
    %v1442 = vmax.f32 %v1438, %v1440
    %v1443 = vmax.f32 %v1441, %v1442
    %1445 = vrot.lane.b32.xlu0 %v1428, 64
    %v1446 = vpop.permute.xlu0 %1445
    %v1448 = vsel %vm247, %v1443, %v1446
    %v1449 = vld [vmem:[#allocation2] sm:$0xff]
    %v1450 = vld [vmem:[#allocation2 + $0x8] sm:$0xff]
    %v1451 = vld [vmem:[#allocation2 + $0x10] sm:$0xff]
    %v1452 = vld [vmem:[#allocation2 + $0x18] sm:$0xff]
    %v1453 = vld [vmem:[#allocation2 + $0x20] sm:$0xff]
    %v1454 = vld [vmem:[#allocation2 + $0x28] sm:$0xff]
    %v1455 = vld [vmem:[#allocation2 + $0x30] sm:$0xff]
    %v1456 = vld [vmem:[#allocation2 + $0x38] sm:$0xff]
    %v1457 = vld [vmem:[#allocation2 + $0x40] sm:$0xff]
    %v1458 = vld [vmem:[#allocation2 + $0x48] sm:$0xff]
    %v1459 = vld [vmem:[#allocation2 + $0x50] sm:$0xff]
    %v1460 = vld [vmem:[#allocation2 + $0x58] sm:$0xff]
    %v1461 = vld [vmem:[#allocation2 + $0x60] sm:$0xff]
    %v1462 = vld [vmem:[#allocation2 + $0x68] sm:$0xff]
    %v1463 = vld [vmem:[#allocation2 + $0x70] sm:$0xff]
    %v1464 = vld [vmem:[#allocation2 + $0x78] sm:$0xff]
    %v1465 = vld [vmem:[%s10] sm:$0x1]
    %v1467 = vlaneseq
    %v1468 = vshrl.u32 %v1467, 7
    %v1469 = vsub.s32 0, %v1468
    %v1470 = vrot.slane %v1465, %v1469
    %1472 = vmatprep.subr.mxu0 0.0
    %1473 = vmatpush1.msra.mxu0 %v1449
    %1474 = vmatprep.subr.mxu0 0.0
    %1475 = vmatpush1.msra.mxu0 %v1450
    %1476 = vmatprep.subr.mxu0 0.0
    %1477 = vmatpush1.msra.mxu0 %v1451
    %1478 = vmatprep.subr.mxu0 0.0
    %1479 = vmatpush1.msra.mxu0 %v1452
    %1480 = vmatprep.subr.mxu0 0.0
    %1481 = vmatpush1.msra.mxu0 %v1453
    %1482 = vmatprep.subr.mxu0 0.0
    %1483 = vmatpush1.msra.mxu0 %v1454
    %1484 = vmatprep.subr.mxu0 0.0
    %1485 = vmatpush1.msra.mxu0 %v1455
    %1486 = vmatprep.subr.mxu0 0.0
    %1487 = vmatpush1.msra.mxu0 %v1456
    %1488 = vmatprep.subr.mxu0 0.0
    %1489 = vmatpush1.msra.mxu0 %v1457
    %1490 = vmatprep.subr.mxu0 0.0
    %1491 = vmatpush1.msra.mxu0 %v1458
    %1492 = vmatprep.subr.mxu0 0.0
    %1493 = vmatpush1.msra.mxu0 %v1459
    %1494 = vmatprep.subr.mxu0 0.0
    %1495 = vmatpush1.msra.mxu0 %v1460
    %1496 = vmatprep.subr.mxu0 0.0
    %1497 = vmatpush1.msra.mxu0 %v1461
    %1498 = vmatprep.subr.mxu0 0.0
    %1499 = vmatpush1.msra.mxu0 %v1462
    %1500 = vmatprep.subr.mxu0 0.0
    %1501 = vmatpush1.msra.mxu0 %v1463
    %1502 = vmatprep.subr.mxu0 0.0
    %1503 = vmatpush1.msra.mxu0 %v1464
    %1504 = vmatprep.subr.mxu0 0.0
    %1505 = vmatpush1.msra.mxu0 0.0
    %1506 = vmatprep.subr.mxu0 0.0
    %1507 = vmatpush1.msra.mxu0 0.0
    %1508 = vmatprep.subr.mxu0 0.0
    %1509 = vmatpush1.msra.mxu0 0.0
    %1510 = vmatprep.subr.mxu0 0.0
    %1511 = vmatpush1.msra.mxu0 0.0
    %1512 = vmatprep.subr.mxu0 0.0
    %1513 = vmatpush1.msra.mxu0 0.0
    %1514 = vmatprep.subr.mxu0 0.0
    %1515 = vmatpush1.msra.mxu0 0.0
    %1516 = vmatprep.subr.mxu0 0.0
    %1517 = vmatpush1.msra.mxu0 0.0
    %1518 = vmatprep.subr.mxu0 0.0
    %1519 = vmatpush1.msra.mxu0 0.0
    %1520 = vmatprep.subr.mxu0 0.0
    %1521 = vmatpush1.msra.mxu0 0.0
    %1522 = vmatprep.subr.mxu0 0.0
    %1523 = vmatpush1.msra.mxu0 0.0
    %1524 = vmatprep.subr.mxu0 0.0
    %1525 = vmatpush1.msra.mxu0 0.0
    %1526 = vmatprep.subr.mxu0 0.0
    %1527 = vmatpush1.msra.mxu0 0.0
    %1528 = vmatprep.subr.mxu0 0.0
    %1529 = vmatpush1.msra.mxu0 0.0
    %1530 = vmatprep.subr.mxu0 0.0
    %1531 = vmatpush1.msra.mxu0 0.0
    %1532 = vmatprep.subr.mxu0 0.0
    %1533 = vmatpush1.msra.mxu0 0.0
    %1534 = vmatprep.subr.mxu0 0.0
    %1535 = vmatpush1.msra.mxu0 0.0
    %1536 = vmatprep.mubr.f32.mxu0 0.0
    %1537 = vmatmul.mubr.f32.gmra.mrb[0].mxu0 %v1448
    %v1538 = vpop.f32.mrb[0].mxu0
    %v1539 = vadd.f32 %v1470, %v1538
    %v1540 = vpop.f32.mrb[0].mxu0
    %1541 = vdwg.mxu0
    %1542 = vst [vmem:[#allocation6] sm:$0xff] %v1539
    // Predicated region
    $region50: #{tpu_custom_call.1} parent=1 // pred_check
      _
    $region51: #{tpu_custom_call.1} parent=1 // pred_check_branch
      %1544 = sbr.rel (0) target = $region53
    $region52: #{tpu_custom_call.1} parent=1 // pred_region
      %s1546 = ssub.s32 1024, 1024
      %1547 = vsyncadd [#allocation4], %s1546
      %s1548 = sshll.u32 [#allocation5], 4
      %s1549 = int_to_ptr.vmem [resolvable:$true] %s1548
      %1554 = dma.vmem_to_hbm [thread:$0]  %s1549, 1024, %s11, [#allocation4], 128, 128, 8
    $region53: #{tpu_custom_call.1} parent=1 // pred_fallthru
      _
    // Predicated region
    $region54: #{tpu_custom_call.1} parent=1 // pred_check
      _
    $region55: #{tpu_custom_call.1} parent=1 // pred_check_branch
      %1556 = sbr.rel (0) target = $region57
    $region56: #{tpu_custom_call.1} parent=1 // pred_region
      %s1558 = ssub.s32 128, 128
      %1559 = vsyncadd [#allocation7], %s1558
      %s1561 = sshll.u32 [#allocation6], 4
      %s1562 = int_to_ptr.vmem [resolvable:$true] %s1561
      %1564 = dma.vmem_to_hbm [thread:$0]  %s1562, 128, %s12, [#allocation7]
    $region57: #{tpu_custom_call.1} parent=1 // pred_fallthru
      _
    // Predicated region
    $region58: #{tpu_custom_call.1} parent=1 // pred_check
      _
    $region59: #{tpu_custom_call.1} parent=1 // pred_check_branch
      %1566 = sbr.rel (0) target = $region61
    $region60: #{tpu_custom_call.1} parent=1 // pred_region
      %1567 = dma.done [#allocation4], 1024
    $region61: #{tpu_custom_call.1} parent=1 // pred_fallthru
      _
    // Predicated region
    $region62: #{tpu_custom_call.1} parent=1 // pred_check
      _
    $region63: #{tpu_custom_call.1} parent=1 // pred_check_branch
      %1569 = sbr.rel (0) target = $region65
    $region64: #{tpu_custom_call.1} parent=1 // pred_region
      %1570 = dma.done [#allocation7], 128
    $region65: #{tpu_custom_call.1} parent=1 // pred_fallthru
      _
    %1571 = vsyncpa [#allocation3], 1
    %1572 = vsyncpa [#allocation4], 1
    %1573 = vsyncpa [#allocation7], 1

</llo_original>
